<compile_context>
chip_gen: v7x
topology: tpu7x:2x2x1
jax: 0.10.0
libtpu: 0.0.40
codegen_flags: <defaults>
</compile_context>

<pallas_src>
import functools

import jax
import jax.numpy as jnp
from jax.experimental import pallas as pl
from jax.experimental.pallas import tpu as pltpu


def _embed_kernel(lf_ref, x_ref, w1_ref, b1_ref, w2_ref, b2_ref, wc3_ref, bc_ref,
                  out_ref, *, W, E):
    f32 = jnp.float32

    # ---- lambda projection MLP (transposed: features on sublanes, rows on lanes) ----
    lf = lf_ref[...].astype(f32)                                              # [3, TM]
    h1 = jnp.dot(w1_ref[...], lf, preferred_element_type=f32) + b1_ref[...]   # [E2, TM]
    h1 = jnp.maximum(h1, 0.0)
    lam = jnp.dot(w2_ref[...], h1, preferred_element_type=f32) + b2_ref[...]  # [E, TM]

    # ---- (1,3) conv, pad=1, + ReLU + mean over W, in w-major flat layout ----
    xf = x_ref[...].astype(f32)                       # [C, L], column = w*TM + m
    L = xf.shape[-1]
    TM = L // W
    # all three taps' channel contractions in one K=3 MXU dot: y[k*E+e, :] = wc[e,:,k] . x
    y = jnp.dot(wc3_ref[...], xf, preferred_element_type=f32)                 # [3E, L]
    y0 = y[0 * E:1 * E]       # tap at w-1
    y1 = y[1 * E:2 * E]       # tap at w
    y2 = y[2 * E:3 * E]       # tap at w+1
    z = jnp.zeros((E, TM), f32)
    # shift by whole w-groups (tm-lane, i.e. >=128-lane, aligned moves); zero pad at edges
    left = jnp.concatenate([z, y0[:, :L - TM]], axis=1)      # value of y0 at w-1
    right = jnp.concatenate([y2[:, TM:], z], axis=1)         # value of y2 at w+1
    conv = jnp.maximum(left + y1 + right + bc_ref[...], 0.0)                  # [E, L]

    # mean over W: sum the W aligned column-chunks of width TM
    acc = conv[:, 0:TM]
    for w in range(1, W):
        acc = acc + conv[:, w * TM:(w + 1) * TM]
    feat = acc * (1.0 / W)                                                    # [E, TM]

    # fused lane-dense output slab: rows [0,E) = lambda_emb, rows [E,2E) = feat_emb
    out_ref[:E, :] = lam
    out_ref[E:, :] = feat


def embedding_strategy_3chans(x, lambdas, deltas, window_mask, params, *,
                              tm=256, input_dtype=None):
    """x: [N, 3, H, W] (NCHW, like PyTorch).  Returns (lambda_emb, feat_emb), each [N, H, E].

    tm: rows per block (lane dim of every block); multiple of 128.  Raise toward
        512-1024 for large problems (re-check VMEM on v7x / v5e).
    input_dtype: optional storage dtype for the big inputs (e.g. jnp.bfloat16 on
        v6e/v7x); compute stays float32 in-kernel.
    """
    N, C, H, W = x.shape
    assert C == 3, "EmbeddingStrategy3Chans requires in_chans == 3"
    w1, b1 = params["w1"], params["b1"]          # [E2, 3], [E2]   (PyTorch Linear layout)
    w2, b2 = params["w2"], params["b2"]          # [E,  E2], [E]
    wc, bc = params["wc"], params["bc"]          # [E, C, 3], [E]  (Conv2d weight, kH squeezed)
    E2, E = w1.shape[0], w2.shape[0]
    assert wc.shape == (E, C, 3)
    assert E % 8 == 0 and E2 % 8 == 0, "embed_dim and embed_dim//2 must be multiples of 8"
    assert tm % 128 == 0, "tm must be a multiple of 128 (lane dimension)"

    M = N * H
    G = -(-M // tm)             # cdiv
    Mp = G * tm

    # --- layout plumbing (wrapper-side; cheap XLA transposes) ---
    # lambda features, transposed: [3, M]
    lf = jnp.stack([lambdas, deltas, window_mask], axis=0).reshape(3, M)
    # x rows, transposed: xt[c, w, m] with m = n*H + h
    xt = jnp.transpose(x, (1, 3, 0, 2)).reshape(C, W, M)
    if Mp != M:
        lf = jnp.pad(lf, ((0, 0), (0, Mp - M)))
        xt = jnp.pad(xt, ((0, 0), (0, 0), (0, Mp - M)))
    # per-block w-major flattening: xfb[g, c, w*tm + r] = x row (g*tm + r)
    xfb = xt.reshape(C, W, G, tm).transpose(2, 0, 1, 3).reshape(G, C, W * tm)

    if input_dtype is not None:
        lf = lf.astype(input_dtype)
        xfb = xfb.astype(input_dtype)

    # weights stay f32; group conv weight per-tap: wc3[k*E + e, c] = wc[e, c, k]
    f32 = jnp.float32
    wc3 = jnp.transpose(wc, (2, 0, 1)).reshape(3 * E, C).astype(f32)
    w1f, w2f = w1.astype(f32), w2.astype(f32)
    b1c = b1.reshape(E2, 1).astype(f32)
    b2c = b2.reshape(E, 1).astype(f32)
    bcc = bc.reshape(E, 1).astype(f32)

    kernel = functools.partial(_embed_kernel, W=W, E=E)
    out = pl.pallas_call(
        kernel,
        out_shape=jax.ShapeDtypeStruct((2 * E, Mp), jnp.float32),
        grid_spec=pltpu.PrefetchScalarGridSpec(
            num_scalar_prefetch=0,
            grid=(G,),
            in_specs=[
                pl.BlockSpec((3, tm), lambda i: (0, i)),                 # lambda features
                pl.BlockSpec((None, C, W * tm), lambda i: (i, 0, 0)),    # x block (w-major flat)
                pl.BlockSpec((E2, 3), lambda i: (0, 0)),                 # w1
                pl.BlockSpec((E2, 1), lambda i: (0, 0)),                 # b1
                pl.BlockSpec((E, E2), lambda i: (0, 0)),                 # w2
                pl.BlockSpec((E, 1), lambda i: (0, 0)),                  # b2
                pl.BlockSpec((3 * E, C), lambda i: (0, 0)),              # conv weight (per-tap)
                pl.BlockSpec((E, 1), lambda i: (0, 0)),                  # conv bias
            ],
            out_specs=pl.BlockSpec((2 * E, tm), lambda i: (0, i)),       # fused lane-dense out
        ),
        compiler_params=pltpu.CompilerParams(dimension_semantics=("parallel",)),
    )(lf, xfb, w1f, b1c, w2f, b2c, wc3, bcc)

    out = out[:, :M]
    lambda_emb = out[:E].T.reshape(N, H, E)
    feat_emb = out[E:].T.reshape(N, H, E)
    return lambda_emb, feat_emb


def init_params(key, embed_dim, in_chans=3):
    """Deterministic synthetic params in PyTorch layouts (Linear: [out,in]; Conv: [out,in,kW])."""
    e2 = embed_dim // 2
    k1, k2, k3, k4, k5, k6 = jax.random.split(key, 6)
    return {
        "w1": jax.random.normal(k1, (e2, 3), jnp.float32) * 0.3,
        "b1": jax.random.normal(k2, (e2,), jnp.float32) * 0.1,
        "w2": jax.random.normal(k3, (embed_dim, e2), jnp.float32) * 0.3,
        "b2": jax.random.normal(k4, (embed_dim,), jnp.float32) * 0.1,
        "wc": jax.random.normal(k5, (embed_dim, in_chans, 3), jnp.float32) * 0.3,
        "bc": jax.random.normal(k6, (embed_dim,), jnp.float32) * 0.1,
    }


def _reference(x, lambdas, deltas, window_mask, params):
    """Pure-JAX reference mirroring the PyTorch forward."""
    N, C, H, W = x.shape
    w1, b1, w2, b2, wc, bc = (params[k] for k in ("w1", "b1", "w2", "b2", "wc", "bc"))
    lf = jnp.stack([lambdas, deltas, window_mask], axis=-1)                  # [N, H, 3]
    h1 = jnp.maximum(jnp.einsum("nhf,ef->nhe", lf, w1) + b1, 0.0)
    lambda_emb = jnp.einsum("nhk,ek->nhe", h1, w2) + b2
    xp = jnp.pad(x, ((0, 0), (0, 0), (0, 0), (1, 1)))                        # conv pad (0,1)
    conv = sum(
        jnp.einsum("nchw,ec->nhwe", xp[:, :, :, k:k + W], wc[:, :, k]) for k in range(3)
    ) + bc
    conv = jnp.maximum(conv, 0.0)
    feat_emb = conv.mean(axis=2)                                             # mean over W only
    return lambda_emb, feat_emb


if __name__ == "__main__":
    # Small shapes consistent with the module: x [N, 3, H, W], lambdas/deltas/mask [N, H]
    N, C, H, W, E = 2, 3, 128, 16, 32
    key = jax.random.PRNGKey(0)
    kx, kl, kd, km, kp = jax.random.split(key, 5)

    x = jax.random.normal(kx, (N, C, H, W), jnp.float32)
    lambdas = jax.random.normal(kl, (N, H), jnp.float32)
    deltas = jax.random.normal(kd, (N, H), jnp.float32)
    window_mask = (jax.random.uniform(km, (N, H)) > 0.3).astype(jnp.float32)
    params = init_params(kp, E, in_chans=C)

    # f32 path (tm=128 -> 2 grid steps, lane-dense blocks)
    lambda_emb, feat_emb = embedding_strategy_3chans(
        x, lambdas, deltas, window_mask, params, tm=128)
    jax.block_until_ready((lambda_emb, feat_emb))

    ref_lambda, ref_feat = _reference(x, lambdas, deltas, window_mask, params)
    assert lambda_emb.shape == (N, H, E) and feat_emb.shape == (N, H, E)
    assert jnp.allclose(lambda_emb, ref_lambda, atol=1e-4, rtol=1e-4)
    assert jnp.allclose(feat_emb, ref_feat, atol=1e-4, rtol=1e-4)

    # bf16 input-storage path (halves HBM read bytes on v6e/v7x); compute stays f32 in-kernel.
    lam_bf, feat_bf = embedding_strategy_3chans(
        x, lambdas, deltas, window_mask, params, tm=128, input_dtype=jnp.bfloat16)
    jax.block_until_ready((lam_bf, feat_bf))
    assert jnp.allclose(lam_bf, ref_lambda, atol=1e-1, rtol=1e-1)
    assert jnp.allclose(feat_bf, ref_feat, atol=1e-1, rtol=1e-1)

    print("KERNEL_OK")
</pallas_src>

<mosaic_0001>
module attributes {stable_mosaic.version = 11 : i64} {
  func.func @_embed_kernel(%arg0: i32, %arg1: memref<3x128xf32, #tpu.memory_space<vmem>>, %arg2: memref<1x3x2048xf32, #tpu.memory_space<vmem>>, %arg3: memref<16x3xf32, #tpu.memory_space<vmem>>, %arg4: memref<16x1xf32, #tpu.memory_space<vmem>>, %arg5: memref<32x16xf32, #tpu.memory_space<vmem>>, %arg6: memref<32x1xf32, #tpu.memory_space<vmem>>, %arg7: memref<96x3xf32, #tpu.memory_space<vmem>>, %arg8: memref<32x1xf32, #tpu.memory_space<vmem>>, %arg9: memref<64x128xf32, #tpu.memory_space<vmem>>) attributes {dimension_semantics = [#tpu.dimension_semantics<parallel>], iteration_bounds = array<i64: 2>, scalar_prefetch = 0 : i64, scratch_operands = 0 : i64, tpu.core_type = #tpu.core_type<tc>, window_params = [{transform_indices = @transform_0, window_bounds = array<i64: 3, 128>}, {transform_indices = @transform_1, window_bounds = array<i64: 1, 3, 2048>}, {pipeline_mode = #tpu.pipeline_mode<synchronous>, transform_indices = @transform_2, window_bounds = array<i64: 16, 3>}, {pipeline_mode = #tpu.pipeline_mode<synchronous>, transform_indices = @transform_3, window_bounds = array<i64: 16, 1>}, {pipeline_mode = #tpu.pipeline_mode<synchronous>, transform_indices = @transform_4, window_bounds = array<i64: 32, 16>}, {pipeline_mode = #tpu.pipeline_mode<synchronous>, transform_indices = @transform_5, window_bounds = array<i64: 32, 1>}, {pipeline_mode = #tpu.pipeline_mode<synchronous>, transform_indices = @transform_6, window_bounds = array<i64: 96, 3>}, {pipeline_mode = #tpu.pipeline_mode<synchronous>, transform_indices = @transform_7, window_bounds = array<i64: 32, 1>}, {transform_indices = @transform_8, window_bounds = array<i64: 64, 128>}]} {
    %c0 = arith.constant 0 : index
    %c0_0 = arith.constant 0 : index
    %0 = vector.load %arg1[%c0, %c0_0] : memref<3x128xf32, #tpu.memory_space<vmem>>, vector<3x128xf32>
    %c0_1 = arith.constant 0 : index
    %c0_2 = arith.constant 0 : index
    %1 = vector.load %arg3[%c0_1, %c0_2] : memref<16x3xf32, #tpu.memory_space<vmem>>, vector<16x3xf32>
    %cst = arith.constant dense<0.000000e+00> : vector<16x128xf32>
    %2 = tpu.matmul %1, %0, %cst {dimension_numbers = #tpu.dot_dimension_numbers<[1], [0], [0], [1], [0, 0, 1, 1], [], []>} : vector<16x3xf32>, vector<3x128xf32>, vector<16x128xf32> -> vector<16x128xf32>
    %c0_3 = arith.constant 0 : index
    %c0_4 = arith.constant 0 : index
    %3 = vector.load %arg4[%c0_3, %c0_4] : memref<16x1xf32, #tpu.memory_space<vmem>>, vector<16x1xf32>
    %4 = vector.broadcast %3 : vector<16x1xf32> to vector<16x128xf32>
    %5 = arith.addf %2, %4 : vector<16x128xf32>
    %cst_5 = arith.constant 0.000000e+00 : f32
    %6 = vector.broadcast %cst_5 : f32 to vector<16x128xf32>
    %7 = arith.maximumf %5, %6 : vector<16x128xf32>
    %c0_6 = arith.constant 0 : index
    %c0_7 = arith.constant 0 : index
    %8 = vector.load %arg5[%c0_6, %c0_7] : memref<32x16xf32, #tpu.memory_space<vmem>>, vector<32x16xf32>
    %cst_8 = arith.constant dense<0.000000e+00> : vector<32x128xf32>
    %9 = tpu.matmul %8, %7, %cst_8 {dimension_numbers = #tpu.dot_dimension_numbers<[1], [0], [0], [1], [0, 0, 1, 1], [], []>} : vector<32x16xf32>, vector<16x128xf32>, vector<32x128xf32> -> vector<32x128xf32>
    %c0_9 = arith.constant 0 : index
    %c0_10 = arith.constant 0 : index
    %10 = vector.load %arg6[%c0_9, %c0_10] : memref<32x1xf32, #tpu.memory_space<vmem>>, vector<32x1xf32>
    %11 = vector.broadcast %10 : vector<32x1xf32> to vector<32x128xf32>
    %12 = arith.addf %9, %11 : vector<32x128xf32>
    %c0_11 = arith.constant 0 : index
    %c0_12 = arith.constant 0 : index
    %c0_13 = arith.constant 0 : index
    %13 = vector.load %arg2[%c0_11, %c0_12, %c0_13] : memref<1x3x2048xf32, #tpu.memory_space<vmem>>, vector<1x3x2048xf32>
    %14 = vector.shape_cast %13 : vector<1x3x2048xf32> to vector<3x2048xf32>
    %c0_14 = arith.constant 0 : index
    %c0_15 = arith.constant 0 : index
    %15 = vector.load %arg7[%c0_14, %c0_15] : memref<96x3xf32, #tpu.memory_space<vmem>>, vector<96x3xf32>
    %cst_16 = arith.constant dense<0.000000e+00> : vector<96x2048xf32>
    %16 = tpu.matmul %15, %14, %cst_16 {dimension_numbers = #tpu.dot_dimension_numbers<[1], [0], [0], [1], [0, 0, 1, 1], [], []>} : vector<96x3xf32>, vector<3x2048xf32>, vector<96x2048xf32> -> vector<96x2048xf32>
    %17 = vector.extract_strided_slice %16 {offsets = [0, 0], sizes = [32, 2048], strides = [1, 1]} : vector<96x2048xf32> to vector<32x2048xf32>
    %18 = vector.extract_strided_slice %16 {offsets = [32, 0], sizes = [32, 2048], strides = [1, 1]} : vector<96x2048xf32> to vector<32x2048xf32>
    %19 = vector.extract_strided_slice %16 {offsets = [64, 0], sizes = [32, 2048], strides = [1, 1]} : vector<96x2048xf32> to vector<32x2048xf32>
    %cst_17 = arith.constant 0.000000e+00 : f32
    %20 = vector.broadcast %cst_17 : f32 to vector<32x128xf32>
    %21 = vector.extract_strided_slice %17 {offsets = [0, 0], sizes = [32, 1920], strides = [1, 1]} : vector<32x2048xf32> to vector<32x1920xf32>
    %22 = tpu.concatenate %20, %21 in 1 : vector<32x128xf32>, vector<32x1920xf32> -> vector<32x2048xf32>
    %23 = vector.extract_strided_slice %19 {offsets = [0, 128], sizes = [32, 1920], strides = [1, 1]} : vector<32x2048xf32> to vector<32x1920xf32>
    %24 = tpu.concatenate %23, %20 in 1 : vector<32x1920xf32>, vector<32x128xf32> -> vector<32x2048xf32>
    %25 = arith.addf %22, %18 : vector<32x2048xf32>
    %26 = arith.addf %25, %24 : vector<32x2048xf32>
    %c0_18 = arith.constant 0 : index
    %c0_19 = arith.constant 0 : index
    %27 = vector.load %arg8[%c0_18, %c0_19] : memref<32x1xf32, #tpu.memory_space<vmem>>, vector<32x1xf32>
    %28 = vector.broadcast %27 : vector<32x1xf32> to vector<32x2048xf32>
    %29 = arith.addf %26, %28 : vector<32x2048xf32>
    %cst_20 = arith.constant 0.000000e+00 : f32
    %30 = vector.broadcast %cst_20 : f32 to vector<32x2048xf32>
    %31 = arith.maximumf %29, %30 : vector<32x2048xf32>
    %32 = vector.extract_strided_slice %31 {offsets = [0, 0], sizes = [32, 128], strides = [1, 1]} : vector<32x2048xf32> to vector<32x128xf32>
    %33 = vector.extract_strided_slice %31 {offsets = [0, 128], sizes = [32, 128], strides = [1, 1]} : vector<32x2048xf32> to vector<32x128xf32>
    %34 = arith.addf %32, %33 : vector<32x128xf32>
    %35 = vector.extract_strided_slice %31 {offsets = [0, 256], sizes = [32, 128], strides = [1, 1]} : vector<32x2048xf32> to vector<32x128xf32>
    %36 = arith.addf %34, %35 : vector<32x128xf32>
    %37 = vector.extract_strided_slice %31 {offsets = [0, 384], sizes = [32, 128], strides = [1, 1]} : vector<32x2048xf32> to vector<32x128xf32>
    %38 = arith.addf %36, %37 : vector<32x128xf32>
    %39 = vector.extract_strided_slice %31 {offsets = [0, 512], sizes = [32, 128], strides = [1, 1]} : vector<32x2048xf32> to vector<32x128xf32>
    %40 = arith.addf %38, %39 : vector<32x128xf32>
    %41 = vector.extract_strided_slice %31 {offsets = [0, 640], sizes = [32, 128], strides = [1, 1]} : vector<32x2048xf32> to vector<32x128xf32>
    %42 = arith.addf %40, %41 : vector<32x128xf32>
    %43 = vector.extract_strided_slice %31 {offsets = [0, 768], sizes = [32, 128], strides = [1, 1]} : vector<32x2048xf32> to vector<32x128xf32>
    %44 = arith.addf %42, %43 : vector<32x128xf32>
    %45 = vector.extract_strided_slice %31 {offsets = [0, 896], sizes = [32, 128], strides = [1, 1]} : vector<32x2048xf32> to vector<32x128xf32>
    %46 = arith.addf %44, %45 : vector<32x128xf32>
    %47 = vector.extract_strided_slice %31 {offsets = [0, 1024], sizes = [32, 128], strides = [1, 1]} : vector<32x2048xf32> to vector<32x128xf32>
    %48 = arith.addf %46, %47 : vector<32x128xf32>
    %49 = vector.extract_strided_slice %31 {offsets = [0, 1152], sizes = [32, 128], strides = [1, 1]} : vector<32x2048xf32> to vector<32x128xf32>
    %50 = arith.addf %48, %49 : vector<32x128xf32>
    %51 = vector.extract_strided_slice %31 {offsets = [0, 1280], sizes = [32, 128], strides = [1, 1]} : vector<32x2048xf32> to vector<32x128xf32>
    %52 = arith.addf %50, %51 : vector<32x128xf32>
    %53 = vector.extract_strided_slice %31 {offsets = [0, 1408], sizes = [32, 128], strides = [1, 1]} : vector<32x2048xf32> to vector<32x128xf32>
    %54 = arith.addf %52, %53 : vector<32x128xf32>
    %55 = vector.extract_strided_slice %31 {offsets = [0, 1536], sizes = [32, 128], strides = [1, 1]} : vector<32x2048xf32> to vector<32x128xf32>
    %56 = arith.addf %54, %55 : vector<32x128xf32>
    %57 = vector.extract_strided_slice %31 {offsets = [0, 1664], sizes = [32, 128], strides = [1, 1]} : vector<32x2048xf32> to vector<32x128xf32>
    %58 = arith.addf %56, %57 : vector<32x128xf32>
    %59 = vector.extract_strided_slice %31 {offsets = [0, 1792], sizes = [32, 128], strides = [1, 1]} : vector<32x2048xf32> to vector<32x128xf32>
    %60 = arith.addf %58, %59 : vector<32x128xf32>
    %61 = vector.extract_strided_slice %31 {offsets = [0, 1920], sizes = [32, 128], strides = [1, 1]} : vector<32x2048xf32> to vector<32x128xf32>
    %62 = arith.addf %60, %61 : vector<32x128xf32>
    %cst_21 = arith.constant 6.250000e-02 : f32
    %63 = vector.broadcast %cst_21 : f32 to vector<32x128xf32>
    %64 = arith.mulf %62, %63 : vector<32x128xf32>
    %c0_22 = arith.constant 0 : index
    %c0_23 = arith.constant 0 : index
    %65 = vector.load %arg9[%c0_22, %c0_23] : memref<64x128xf32, #tpu.memory_space<vmem>>, vector<32x128xf32>
    tpu.vector_store %arg9[%c0_22, %c0_23], %12 {strides = array<i32>} : memref<64x128xf32, #tpu.memory_space<vmem>>, vector<32x128xf32>,
    %c32 = arith.constant 32 : index
    %c0_24 = arith.constant 0 : index
    %66 = vector.load %arg9[%c32, %c0_24] : memref<64x128xf32, #tpu.memory_space<vmem>>, vector<32x128xf32>
    tpu.vector_store %arg9[%c32, %c0_24], %64 {strides = array<i32>} : memref<64x128xf32, #tpu.memory_space<vmem>>, vector<32x128xf32>,
    return
  }
  func.func @transform_0(%arg0: i32) -> (i32, i32) {
    %c0_i32 = arith.constant 0 : i32
    %c0_i32_0 = arith.constant 0 : i32
    return %c0_i32, %arg0 : i32, i32
  }
  func.func @transform_1(%arg0: i32) -> (i32, i32, i32) {
    %c0_i32 = arith.constant 0 : i32
    %c0_i32_0 = arith.constant 0 : i32
    %c0_i32_1 = arith.constant 0 : i32
    return %arg0, %c0_i32, %c0_i32_0 : i32, i32, i32
  }
  func.func @transform_2(%arg0: i32) -> (i32, i32) {
    %c0_i32 = arith.constant 0 : i32
    %c0_i32_0 = arith.constant 0 : i32
    %c0_i32_1 = arith.constant 0 : i32
    return %c0_i32, %c0_i32_0 : i32, i32
  }
  func.func @transform_3(%arg0: i32) -> (i32, i32) {
    %c0_i32 = arith.constant 0 : i32
    %c0_i32_0 = arith.constant 0 : i32
    %c0_i32_1 = arith.constant 0 : i32
    return %c0_i32, %c0_i32_0 : i32, i32
  }
  func.func @transform_4(%arg0: i32) -> (i32, i32) {
    %c0_i32 = arith.constant 0 : i32
    %c0_i32_0 = arith.constant 0 : i32
    %c0_i32_1 = arith.constant 0 : i32
    return %c0_i32, %c0_i32_0 : i32, i32
  }
  func.func @transform_5(%arg0: i32) -> (i32, i32) {
    %c0_i32 = arith.constant 0 : i32
    %c0_i32_0 = arith.constant 0 : i32
    %c0_i32_1 = arith.constant 0 : i32
    return %c0_i32, %c0_i32_0 : i32, i32
  }
  func.func @transform_6(%arg0: i32) -> (i32, i32) {
    %c0_i32 = arith.constant 0 : i32
    %c0_i32_0 = arith.constant 0 : i32
    %c0_i32_1 = arith.constant 0 : i32
    return %c0_i32, %c0_i32_0 : i32, i32
  }
  func.func @transform_7(%arg0: i32) -> (i32, i32) {
    %c0_i32 = arith.constant 0 : i32
    %c0_i32_0 = arith.constant 0 : i32
    %c0_i32_1 = arith.constant 0 : i32
    return %c0_i32, %c0_i32_0 : i32, i32
  }
  func.func @transform_8(%arg0: i32) -> (i32, i32) {
    %c0_i32 = arith.constant 0 : i32
    %c0_i32_0 = arith.constant 0 : i32
    return %c0_i32, %arg0 : i32, i32
  }
}

</mosaic_0001>

<llo_original>
// kernel: tpu_custom_call.1
$region0: #{tpu_custom_call.1}
  #allocation0 [shape = 'u32[]', space=smem, size = 0x4, offset = 0x4, fixed_abs, tag = 'smem constant byte address 0x4 - core index']
  #allocation1 [shape = 'u32[144,128]{1,0:T(1,128)}', space=vmem, size = 0x12000, scoped, tag = 'internal scratch']
  %s0 = inlined_call_operand.vmem [shape: f32[3,256], index: 0, kind: input, shape index: {}]
  %s1 = inlined_call_operand.vmem [shape: f32[2,3,2048], index: 1, kind: input, shape index: {}]
  %s2 = inlined_call_operand.vmem [shape: f32[16,3], index: 2, kind: input, shape index: {}]
  %s3 = inlined_call_operand.vmem [shape: f32[16,1], index: 3, kind: input, shape index: {}]
  %s4 = inlined_call_operand.vmem [shape: f32[32,16], index: 4, kind: input, shape index: {}]
  %s5 = inlined_call_operand.vmem [shape: f32[32,1], index: 5, kind: input, shape index: {}]
  %s6 = inlined_call_operand.vmem [shape: f32[96,3], index: 6, kind: input, shape index: {}]
  %s7 = inlined_call_operand.vmem [shape: f32[32,1], index: 7, kind: input, shape index: {}]
  %s8 = inlined_call_operand.hbm [shape: f32[64,256], index: 8, kind: output, shape index: {}]
  %s9 = sld [smem:[#allocation0]]
  $region65: #{tpu_custom_call.1} parent=0
    _
  %s11 = ssub.s32 1, %s9
  %s12 = scalar_select 0, %s11, %s9
  $region1: #{tpu_custom_call.1} parent=0
    #allocation2 [shape = 'u8[65536]{0}', space=vmem, size = 0x10000, scoped, tag = 'output window, operand 0']
    #allocation3 [shape = 's32[2]{0}', space=sflag, size = 0x8, scoped, tag = 'scoped memory for tpu_custom_call.1']
    %13 = vsyncpa [#allocation3], 0
    %s14 = scalar_lea.sflag [#allocation3], 1
    %15 = vsyncpa %s14, 0
    loop: start=0, step=1, limit=4
    $region2: #{tpu_custom_call.1} parent=1 // loop_pre_header
      _
    $region3: #{tpu_custom_call.1} parent=1 // loop_header
      %s17 = sphi 0, %s21
      %p18 = scmp.ge.s32.totalorder %s17, 4
      %s27 = sphi 0, %s29
      %s30 = sphi 0, %s27
      %s31 = sphi 0, %s30
      %s47 = sphi 0, %s31
      %s53 = sphi 0, %s55
      %s56 = sphi 0, %s53
      %s57 = sphi 0, %s56
      %s73 = sphi 0, %s57
      %s77 = sphi 0, %s77
      %s79 = sphi 0, %s77
      %s80 = sphi 0, %s79
      %s94 = sphi 0, %s80
      %s98 = sphi 0, %s98
      %s100 = sphi 0, %s98
      %s101 = sphi 0, %s100
      %s115 = sphi 0, %s101
      %s119 = sphi 0, %s119
      %s121 = sphi 0, %s119
      %s122 = sphi 0, %s121
      %s136 = sphi 0, %s122
      %s140 = sphi 0, %s140
      %s142 = sphi 0, %s140
      %s143 = sphi 0, %s142
      %s157 = sphi 0, %s143
      %s161 = sphi 0, %s161
      %s163 = sphi 0, %s161
      %s164 = sphi 0, %s163
      %s178 = sphi 0, %s164
      %s182 = sphi 0, %s182
      %s184 = sphi 0, %s182
      %s185 = sphi 0, %s184
      %s199 = sphi 0, %s185
      %s205 = sphi 0, %s207
      %s208 = sphi 0, %s205
      %s209 = sphi 0, %s208
      %s225 = sphi 0, %s209
    $region4: #{tpu_custom_call.1} parent=1 // loop_header_branch
      %20 = sbr.rel (%p18) target = $region8
    $region5: #{tpu_custom_call.1} parent=1 // loop_body
      %s22 = ssub.s32 %s17, 1
      %s23 = ssub.s32 %s17, 2
      %s24 = sadd.s32 %s17, 1
      %s25 = ssub.s32 %s17, %s24
      %p26 = scmp.eq.s32.totalorder %s25, 0
      %s28 = sadd.s32 %s27, 1
      %s29 = scalar_select %p26, %s27, %s28
      %p32 = pneg %p26
      %p33 = scmp.eq.s32.totalorder %s17, 1
      %p34 = por %p32, %p33
      %p35 = scmp.ne.s32.totalorder %s27, %s30
      %p36 = scmp.eq.s32.totalorder %s17, 0
      %p37 = por %p35, %p36
      %p38 = scmp.ne.s32.totalorder %s27, %s30
      %p39 = scmp.eq.s32.totalorder %s22, 1
      %p40 = por %p38, %p39
      %p41 = scmp.ne.s32.totalorder %s30, %s31
      %p42 = scmp.eq.s32.totalorder %s22, 0
      %p43 = por %p41, %p42
      %p44 = scmp.ne.s32.totalorder %s30, %s31
      %p45 = scmp.eq.s32.totalorder %s23, 1
      %p46 = por %p44, %p45
      %p48 = scmp.ne.s32.totalorder %s31, %s47
      %p49 = scmp.eq.s32.totalorder %s23, 0
      %p50 = por %p48, %p49
      %s51 = ssub.s32 %s17, %s24
      %p52 = scmp.eq.s32.totalorder %s51, 0
      %s54 = sadd.s32 %s53, 1
      %s55 = scalar_select %p52, %s53, %s54
      %p58 = pneg %p52
      %p59 = scmp.eq.s32.totalorder %s17, 1
      %p60 = por %p58, %p59
      %p61 = scmp.ne.s32.totalorder %s53, %s56
      %p62 = scmp.eq.s32.totalorder %s17, 0
      %p63 = por %p61, %p62
      %p64 = scmp.ne.s32.totalorder %s53, %s56
      %p65 = scmp.eq.s32.totalorder %s22, 1
      %p66 = por %p64, %p65
      %p67 = scmp.ne.s32.totalorder %s56, %s57
      %p68 = scmp.eq.s32.totalorder %s22, 0
      %p69 = por %p67, %p68
      %p70 = scmp.ne.s32.totalorder %s56, %s57
      %p71 = scmp.eq.s32.totalorder %s23, 1
      %p72 = por %p70, %p71
      %p74 = scmp.ne.s32.totalorder %s57, %s73
      %p75 = scmp.eq.s32.totalorder %s23, 0
      %p76 = por %p74, %p75
      %s78 = sadd.s32 %s77, 1
      %p81 = scmp.eq.s32.totalorder %s17, 1
      %p82 = scmp.ne.s32.totalorder %s77, %s79
      %p83 = scmp.eq.s32.totalorder %s17, 0
      %p84 = por %p82, %p83
      %p85 = scmp.ne.s32.totalorder %s77, %s79
      %p86 = scmp.eq.s32.totalorder %s22, 1
      %p87 = por %p85, %p86
      %p88 = scmp.ne.s32.totalorder %s79, %s80
      %p89 = scmp.eq.s32.totalorder %s22, 0
      %p90 = por %p88, %p89
      %p91 = scmp.ne.s32.totalorder %s79, %s80
      %p92 = scmp.eq.s32.totalorder %s23, 1
      %p93 = por %p91, %p92
      %p95 = scmp.ne.s32.totalorder %s80, %s94
      %p96 = scmp.eq.s32.totalorder %s23, 0
      %p97 = por %p95, %p96
      %s99 = sadd.s32 %s98, 1
      %p102 = scmp.eq.s32.totalorder %s17, 1
      %p103 = scmp.ne.s32.totalorder %s98, %s100
      %p104 = scmp.eq.s32.totalorder %s17, 0
      %p105 = por %p103, %p104
      %p106 = scmp.ne.s32.totalorder %s98, %s100
      %p107 = scmp.eq.s32.totalorder %s22, 1
      %p108 = por %p106, %p107
      %p109 = scmp.ne.s32.totalorder %s100, %s101
      %p110 = scmp.eq.s32.totalorder %s22, 0
      %p111 = por %p109, %p110
      %p112 = scmp.ne.s32.totalorder %s100, %s101
      %p113 = scmp.eq.s32.totalorder %s23, 1
      %p114 = por %p112, %p113
      %p116 = scmp.ne.s32.totalorder %s101, %s115
      %p117 = scmp.eq.s32.totalorder %s23, 0
      %p118 = por %p116, %p117
      %s120 = sadd.s32 %s119, 1
      %p123 = scmp.eq.s32.totalorder %s17, 1
      %p124 = scmp.ne.s32.totalorder %s119, %s121
      %p125 = scmp.eq.s32.totalorder %s17, 0
      %p126 = por %p124, %p125
      %p127 = scmp.ne.s32.totalorder %s119, %s121
      %p128 = scmp.eq.s32.totalorder %s22, 1
      %p129 = por %p127, %p128
      %p130 = scmp.ne.s32.totalorder %s121, %s122
      %p131 = scmp.eq.s32.totalorder %s22, 0
      %p132 = por %p130, %p131
      %p133 = scmp.ne.s32.totalorder %s121, %s122
      %p134 = scmp.eq.s32.totalorder %s23, 1
      %p135 = por %p133, %p134
      %p137 = scmp.ne.s32.totalorder %s122, %s136
      %p138 = scmp.eq.s32.totalorder %s23, 0
      %p139 = por %p137, %p138
      %s141 = sadd.s32 %s140, 1
      %p144 = scmp.eq.s32.totalorder %s17, 1
      %p145 = scmp.ne.s32.totalorder %s140, %s142
      %p146 = scmp.eq.s32.totalorder %s17, 0
      %p147 = por %p145, %p146
      %p148 = scmp.ne.s32.totalorder %s140, %s142
      %p149 = scmp.eq.s32.totalorder %s22, 1
      %p150 = por %p148, %p149
      %p151 = scmp.ne.s32.totalorder %s142, %s143
      %p152 = scmp.eq.s32.totalorder %s22, 0
      %p153 = por %p151, %p152
      %p154 = scmp.ne.s32.totalorder %s142, %s143
      %p155 = scmp.eq.s32.totalorder %s23, 1
      %p156 = por %p154, %p155
      %p158 = scmp.ne.s32.totalorder %s143, %s157
      %p159 = scmp.eq.s32.totalorder %s23, 0
      %p160 = por %p158, %p159
      %s162 = sadd.s32 %s161, 1
      %p165 = scmp.eq.s32.totalorder %s17, 1
      %p166 = scmp.ne.s32.totalorder %s161, %s163
      %p167 = scmp.eq.s32.totalorder %s17, 0
      %p168 = por %p166, %p167
      %p169 = scmp.ne.s32.totalorder %s161, %s163
      %p170 = scmp.eq.s32.totalorder %s22, 1
      %p171 = por %p169, %p170
      %p172 = scmp.ne.s32.totalorder %s163, %s164
      %p173 = scmp.eq.s32.totalorder %s22, 0
      %p174 = por %p172, %p173
      %p175 = scmp.ne.s32.totalorder %s163, %s164
      %p176 = scmp.eq.s32.totalorder %s23, 1
      %p177 = por %p175, %p176
      %p179 = scmp.ne.s32.totalorder %s164, %s178
      %p180 = scmp.eq.s32.totalorder %s23, 0
      %p181 = por %p179, %p180
      %s183 = sadd.s32 %s182, 1
      %p186 = scmp.eq.s32.totalorder %s17, 1
      %p187 = scmp.ne.s32.totalorder %s182, %s184
      %p188 = scmp.eq.s32.totalorder %s17, 0
      %p189 = por %p187, %p188
      %p190 = scmp.ne.s32.totalorder %s182, %s184
      %p191 = scmp.eq.s32.totalorder %s22, 1
      %p192 = por %p190, %p191
      %p193 = scmp.ne.s32.totalorder %s184, %s185
      %p194 = scmp.eq.s32.totalorder %s22, 0
      %p195 = por %p193, %p194
      %p196 = scmp.ne.s32.totalorder %s184, %s185
      %p197 = scmp.eq.s32.totalorder %s23, 1
      %p198 = por %p196, %p197
      %p200 = scmp.ne.s32.totalorder %s185, %s199
      %p201 = scmp.eq.s32.totalorder %s23, 0
      %p202 = por %p200, %p201
      %s203 = ssub.s32 %s17, %s24
      %p204 = scmp.eq.s32.totalorder %s203, 0
      %s206 = sadd.s32 %s205, 1
      %s207 = scalar_select %p204, %s205, %s206
      %p210 = pneg %p204
      %p211 = scmp.eq.s32.totalorder %s17, 1
      %p212 = por %p210, %p211
      %p213 = scmp.ne.s32.totalorder %s205, %s208
      %p214 = scmp.eq.s32.totalorder %s17, 0
      %p215 = por %p213, %p214
      %p216 = scmp.ne.s32.totalorder %s205, %s208
      %p217 = scmp.eq.s32.totalorder %s22, 1
      %p218 = por %p216, %p217
      %p219 = scmp.ne.s32.totalorder %s208, %s209
      %p220 = scmp.eq.s32.totalorder %s22, 0
      %p221 = por %p219, %p220
      %p222 = scmp.ne.s32.totalorder %s208, %s209
      %p223 = scmp.eq.s32.totalorder %s23, 1
      %p224 = por %p222, %p223
      %p226 = scmp.ne.s32.totalorder %s209, %s225
      %p227 = scmp.eq.s32.totalorder %s23, 0
      %p228 = por %p226, %p227
      %p229 = scmp.le.s32.totalorder 1, %s17
      %p230 = scmp.lt.s32.totalorder %s17, 3
      %p231 = pnand %p229, %p230
      %p232 = pneg %p231
      // Predicated region
      $region9: #{tpu_custom_call.1} parent=5 // pred_check
        _
      $region10: #{tpu_custom_call.1} parent=5 // pred_check_branch
        %234 = sbr.rel (%p231) target = $region12
      $region11: #{tpu_custom_call.1} parent=5 // pred_region
        %s235 = ssub.s32 %s17, 1
        // Predicated region
        $region13: #{tpu_custom_call.1} parent=11 // pred_check
          %p236 = pneg %p90
        $region14: #{tpu_custom_call.1} parent=11 // pred_check_branch
          %238 = sbr.rel (%p236) target = $region16
        $region15: #{tpu_custom_call.1} parent=11 // pred_region
          _
        $region16: #{tpu_custom_call.1} parent=11 // pred_fallthru
          _
        // Predicated region
        $region17: #{tpu_custom_call.1} parent=11 // pred_check
          %p239 = pneg %p111
        $region18: #{tpu_custom_call.1} parent=11 // pred_check_branch
          %241 = sbr.rel (%p239) target = $region20
        $region19: #{tpu_custom_call.1} parent=11 // pred_region
          _
        $region20: #{tpu_custom_call.1} parent=11 // pred_fallthru
          _
        // Predicated region
        $region21: #{tpu_custom_call.1} parent=11 // pred_check
          %p242 = pneg %p132
        $region22: #{tpu_custom_call.1} parent=11 // pred_check_branch
          %244 = sbr.rel (%p242) target = $region24
        $region23: #{tpu_custom_call.1} parent=11 // pred_region
          _
        $region24: #{tpu_custom_call.1} parent=11 // pred_fallthru
          _
        // Predicated region
        $region25: #{tpu_custom_call.1} parent=11 // pred_check
          %p245 = pneg %p153
        $region26: #{tpu_custom_call.1} parent=11 // pred_check_branch
          %247 = sbr.rel (%p245) target = $region28
        $region27: #{tpu_custom_call.1} parent=11 // pred_region
          _
        $region28: #{tpu_custom_call.1} parent=11 // pred_fallthru
          _
        // Predicated region
        $region29: #{tpu_custom_call.1} parent=11 // pred_check
          %p248 = pneg %p174
        $region30: #{tpu_custom_call.1} parent=11 // pred_check_branch
          %250 = sbr.rel (%p248) target = $region32
        $region31: #{tpu_custom_call.1} parent=11 // pred_region
          _
        $region32: #{tpu_custom_call.1} parent=11 // pred_fallthru
          _
        // Predicated region
        $region33: #{tpu_custom_call.1} parent=11 // pred_check
          %p251 = pneg %p195
        $region34: #{tpu_custom_call.1} parent=11 // pred_check_branch
          %253 = sbr.rel (%p251) target = $region36
        $region35: #{tpu_custom_call.1} parent=11 // pred_region
          _
        $region36: #{tpu_custom_call.1} parent=11 // pred_fallthru
          _
      $region12: #{tpu_custom_call.1} parent=5 // pred_fallthru
        _
      %p254 = scmp.lt.s32.totalorder %s17, 2
      // Predicated region
      $region37: #{tpu_custom_call.1} parent=5 // pred_check
        %p255 = pneg %p254
      $region38: #{tpu_custom_call.1} parent=5 // pred_check_branch
        %257 = sbr.rel (%p255) target = $region40
      $region39: #{tpu_custom_call.1} parent=5 // pred_region
        // Predicated region
        $region41: #{tpu_custom_call.1} parent=39 // pred_check
          %p258 = pneg %p37
        $region42: #{tpu_custom_call.1} parent=39 // pred_check_branch
          %260 = sbr.rel (%p258) target = $region44
        $region43: #{tpu_custom_call.1} parent=39 // pred_region
          %p261 = scmp.lt.s32.totalorder %s17, 1
          %s262 = scalar_select %p261, %s17, 1
          %s263 = smul.addr %s262, 4
          %s264 = scalar_lea.vmem %s0, %s263
        $region44: #{tpu_custom_call.1} parent=39 // pred_fallthru
          _
        // Predicated region
        $region45: #{tpu_custom_call.1} parent=39 // pred_check
          %p265 = pneg %p63
        $region46: #{tpu_custom_call.1} parent=39 // pred_check_branch
          %267 = sbr.rel (%p265) target = $region48
        $region47: #{tpu_custom_call.1} parent=39 // pred_region
          %p268 = scmp.lt.s32.totalorder %s17, 1
          %s269 = scalar_select %p268, %s17, 1
          %s270 = smul.addr %s269, 16
          %s271 = smul.addr %s270, 4
          %s272 = scalar_lea.vmem %s1, %s271
        $region48: #{tpu_custom_call.1} parent=39 // pred_fallthru
          _
      $region40: #{tpu_custom_call.1} parent=5 // pred_fallthru
        _
      %p273 = scmp.le.s32.totalorder 1, %s17
      %p274 = scmp.lt.s32.totalorder %s17, 3
      %p275 = pnand %p273, %p274
      %p276 = pneg %p275
      // Predicated region
      $region49: #{tpu_custom_call.1} parent=5 // pred_check
        _
      $region50: #{tpu_custom_call.1} parent=5 // pred_check_branch
        %278 = sbr.rel (%p275) target = $region52
      $region51: #{tpu_custom_call.1} parent=5 // pred_region
        %s279 = ssub.s32 %s17, 1
        %p280 = scmp.lt.s32.totalorder %s22, 1
        %s281 = scalar_select %p280, %s22, 1
        %s282 = smul.addr %s281, 4
        %s283 = scalar_lea.vmem %s0, %s282
        %p284 = pneg %p43
        %p285 = pneg %p40
        %p286 = scmp.lt.s32.totalorder %s22, 1
        %s287 = scalar_select %p286, %s22, 1
        %s288 = smul.addr %s287, 16
        %s289 = smul.addr %s288, 4
        %s290 = scalar_lea.vmem %s1, %s289
        %p291 = pneg %p69
        %p292 = pneg %p66
        %p293 = pneg %p90
        %p294 = pneg %p87
        %p295 = pneg %p111
        %p296 = pneg %p108
        %p297 = pneg %p132
        %p298 = pneg %p129
        %p299 = pneg %p153
        %p300 = pneg %p150
        %p301 = pneg %p174
        %p302 = pneg %p171
        %p303 = pneg %p195
        %p304 = pneg %p192
        %p305 = pneg %p221
        %p306 = pneg %p218
        %s307 = sand.u32 %s208, 1
        %s308 = scalar_lea.sflag [#allocation3], %s307
        %s309 = sand.u32 %s208, 1
        %s310 = smul.addr %s309, 64
        %s311 = scalar_lea.vmem [#allocation2], %s310
        %p312 = scmp.lt.s32.totalorder %s22, 1
        %s313 = scalar_select %p312, %s22, 1
        %s314 = smul.addr %s313, 4
        %s315 = scalar_lea.vmem %s0, %s314
        %p316 = scmp.lt.s32.totalorder %s22, 1
        %s317 = scalar_select %p316, %s22, 1
        %s318 = smul.addr %s317, 16
        %s319 = smul.addr %s318, 4
        %s320 = scalar_lea.vmem %s1, %s319
        %v321 = vld [vmem:[%s315] sm:$0x7]
        %v322 = vld [vmem:[%s2] sm:$0xff]
        %v323 = vld [vmem:[%s2 + $0x8] sm:$0xff]
        %v324 = vld [vmem:[%s3] sm:$0xff]
        %v325 = vld [vmem:[%s3 + $0x8] sm:$0xff]
        %327 = vset.pattern.permute.xlu0 0
        %328 = vperm.xlu0 %327, %v324
        %v329 = vpop.permute.xlu0 %328
        %332 = vset.pattern.permute.xlu0 0
        %333 = vperm.xlu0 %332, %v325
        %v334 = vpop.permute.xlu0 %333
        %vm336 = vcmask 23552
        %v338 = vsel %vm336, %v322, 0
        %v341 = vsel %vm336, %v323, 0
        %vm343 = vcmask 1042432
        %v345 = vsel %vm343, %v321, 0
        %347 = vmatprep.subr.mxu0 0.0
        %348 = vmatpush1.msra.mxu0 %v345
        %349 = vmatprep.subr.mxu0 0.0
        %350 = vmatpush1.msra.mxu0 0.0
        %351 = vmatprep.subr.mxu0 0.0
        %352 = vmatpush1.msra.mxu0 0.0
        %353 = vmatprep.subr.mxu0 0.0
        %354 = vmatpush1.msra.mxu0 0.0
        %355 = vmatprep.subr.mxu0 0.0
        %356 = vmatpush1.msra.mxu0 0.0
        %357 = vmatprep.subr.mxu0 0.0
        %358 = vmatpush1.msra.mxu0 0.0
        %359 = vmatprep.subr.mxu0 0.0
        %360 = vmatpush1.msra.mxu0 0.0
        %361 = vmatprep.subr.mxu0 0.0
        %362 = vmatpush1.msra.mxu0 0.0
        %363 = vmatprep.subr.mxu0 0.0
        %364 = vmatpush1.msra.mxu0 0.0
        %365 = vmatprep.subr.mxu0 0.0
        %366 = vmatpush1.msra.mxu0 0.0
        %367 = vmatprep.subr.mxu0 0.0
        %368 = vmatpush1.msra.mxu0 0.0
        %369 = vmatprep.subr.mxu0 0.0
        %370 = vmatpush1.msra.mxu0 0.0
        %371 = vmatprep.subr.mxu0 0.0
        %372 = vmatpush1.msra.mxu0 0.0
        %373 = vmatprep.subr.mxu0 0.0
        %374 = vmatpush1.msra.mxu0 0.0
        %375 = vmatprep.subr.mxu0 0.0
        %376 = vmatpush1.msra.mxu0 0.0
        %377 = vmatprep.subr.mxu0 0.0
        %378 = vmatpush1.msra.mxu0 0.0
        %379 = vmatprep.subr.mxu0 0.0
        %380 = vmatpush1.msra.mxu0 0.0
        %381 = vmatprep.subr.mxu0 0.0
        %382 = vmatpush1.msra.mxu0 0.0
        %383 = vmatprep.subr.mxu0 0.0
        %384 = vmatpush1.msra.mxu0 0.0
        %385 = vmatprep.subr.mxu0 0.0
        %386 = vmatpush1.msra.mxu0 0.0
        %387 = vmatprep.subr.mxu0 0.0
        %388 = vmatpush1.msra.mxu0 0.0
        %389 = vmatprep.subr.mxu0 0.0
        %390 = vmatpush1.msra.mxu0 0.0
        %391 = vmatprep.subr.mxu0 0.0
        %392 = vmatpush1.msra.mxu0 0.0
        %393 = vmatprep.subr.mxu0 0.0
        %394 = vmatpush1.msra.mxu0 0.0
        %395 = vmatprep.subr.mxu0 0.0
        %396 = vmatpush1.msra.mxu0 0.0
        %397 = vmatprep.subr.mxu0 0.0
        %398 = vmatpush1.msra.mxu0 0.0
        %399 = vmatprep.subr.mxu0 0.0
        %400 = vmatpush1.msra.mxu0 0.0
        %401 = vmatprep.subr.mxu0 0.0
        %402 = vmatpush1.msra.mxu0 0.0
        %403 = vmatprep.subr.mxu0 0.0
        %404 = vmatpush1.msra.mxu0 0.0
        %405 = vmatprep.subr.mxu0 0.0
        %406 = vmatpush1.msra.mxu0 0.0
        %407 = vmatprep.subr.mxu0 0.0
        %408 = vmatpush1.msra.mxu0 0.0
        %409 = vmatprep.subr.mxu0 0.0
        %410 = vmatpush1.msra.mxu0 0.0
        %411 = vmatprep.mubr.f32.mxu0 0.0
        %412 = vmatmul.mubr.f32.gmra.mrb[0].mxu0 %v338
        %v413 = vpop.f32.mrb[0].mxu0
        %v414 = vadd.f32 %v329, %v413
        %v415 = vpop.f32.mrb[0].mxu0
        %416 = vmatprep.mubr.f32.mxu0 0.0
        %417 = vmatmul.mubr.f32.gmra.mrb[0].mxu0 %v341
        %v418 = vpop.f32.mrb[0].mxu0
        %v419 = vadd.f32 %v334, %v418
        %v420 = vpop.f32.mrb[0].mxu0
        %421 = vdwg.mxu0
        %v422 = vmax.f32 %v414, 0.0
        %v423 = vmax.f32 %v419, 0.0
        %v424 = vld [vmem:[%s4] sm:$0xff]
        %v425 = vld [vmem:[%s4 + $0x8] sm:$0xff]
        %v426 = vld [vmem:[%s4 + $0x10] sm:$0xff]
        %v427 = vld [vmem:[%s4 + $0x18] sm:$0xff]
        %v428 = vld [vmem:[%s5] sm:$0xff]
        %v429 = vld [vmem:[%s5 + $0x8] sm:$0xff]
        %v430 = vld [vmem:[%s5 + $0x10] sm:$0xff]
        %v431 = vld [vmem:[%s5 + $0x18] sm:$0xff]
        %433 = vset.pattern.permute.xlu0 0
        %434 = vperm.xlu0 %433, %v428
        %v435 = vpop.permute.xlu0 %434
        %438 = vset.pattern.permute.xlu0 0
        %439 = vperm.xlu0 %438, %v429
        %v440 = vpop.permute.xlu0 %439
        %443 = vset.pattern.permute.xlu0 0
        %444 = vperm.xlu0 %443, %v430
        %v445 = vpop.permute.xlu0 %444
        %448 = vset.pattern.permute.xlu0 0
        %449 = vperm.xlu0 %448, %v431
        %v450 = vpop.permute.xlu0 %449
        %vm452 = vcmask 130048
        %v454 = vsel %vm452, %v424, 0
        %v457 = vsel %vm452, %v425, 0
        %v460 = vsel %vm452, %v426, 0
        %v463 = vsel %vm452, %v427, 0
        %465 = vmatprep.subr.mxu0 0.0
        %466 = vmatpush1.msra.mxu0 %v422
        %467 = vmatprep.subr.mxu0 0.0
        %468 = vmatpush1.msra.mxu0 %v423
        %469 = vmatprep.subr.mxu0 0.0
        %470 = vmatpush1.msra.mxu0 0.0
        %471 = vmatprep.subr.mxu0 0.0
        %472 = vmatpush1.msra.mxu0 0.0
        %473 = vmatprep.subr.mxu0 0.0
        %474 = vmatpush1.msra.mxu0 0.0
        %475 = vmatprep.subr.mxu0 0.0
        %476 = vmatpush1.msra.mxu0 0.0
        %477 = vmatprep.subr.mxu0 0.0
        %478 = vmatpush1.msra.mxu0 0.0
        %479 = vmatprep.subr.mxu0 0.0
        %480 = vmatpush1.msra.mxu0 0.0
        %481 = vmatprep.subr.mxu0 0.0
        %482 = vmatpush1.msra.mxu0 0.0
        %483 = vmatprep.subr.mxu0 0.0
        %484 = vmatpush1.msra.mxu0 0.0
        %485 = vmatprep.subr.mxu0 0.0
        %486 = vmatpush1.msra.mxu0 0.0
        %487 = vmatprep.subr.mxu0 0.0
        %488 = vmatpush1.msra.mxu0 0.0
        %489 = vmatprep.subr.mxu0 0.0
        %490 = vmatpush1.msra.mxu0 0.0
        %491 = vmatprep.subr.mxu0 0.0
        %492 = vmatpush1.msra.mxu0 0.0
        %493 = vmatprep.subr.mxu0 0.0
        %494 = vmatpush1.msra.mxu0 0.0
        %495 = vmatprep.subr.mxu0 0.0
        %496 = vmatpush1.msra.mxu0 0.0
        %497 = vmatprep.subr.mxu0 0.0
        %498 = vmatpush1.msra.mxu0 0.0
        %499 = vmatprep.subr.mxu0 0.0
        %500 = vmatpush1.msra.mxu0 0.0
        %501 = vmatprep.subr.mxu0 0.0
        %502 = vmatpush1.msra.mxu0 0.0
        %503 = vmatprep.subr.mxu0 0.0
        %504 = vmatpush1.msra.mxu0 0.0
        %505 = vmatprep.subr.mxu0 0.0
        %506 = vmatpush1.msra.mxu0 0.0
        %507 = vmatprep.subr.mxu0 0.0
        %508 = vmatpush1.msra.mxu0 0.0
        %509 = vmatprep.subr.mxu0 0.0
        %510 = vmatpush1.msra.mxu0 0.0
        %511 = vmatprep.subr.mxu0 0.0
        %512 = vmatpush1.msra.mxu0 0.0
        %513 = vmatprep.subr.mxu0 0.0
        %514 = vmatpush1.msra.mxu0 0.0
        %515 = vmatprep.subr.mxu0 0.0
        %516 = vmatpush1.msra.mxu0 0.0
        %517 = vmatprep.subr.mxu0 0.0
        %518 = vmatpush1.msra.mxu0 0.0
        %519 = vmatprep.subr.mxu0 0.0
        %520 = vmatpush1.msra.mxu0 0.0
        %521 = vmatprep.subr.mxu0 0.0
        %522 = vmatpush1.msra.mxu0 0.0
        %523 = vmatprep.subr.mxu0 0.0
        %524 = vmatpush1.msra.mxu0 0.0
        %525 = vmatprep.subr.mxu0 0.0
        %526 = vmatpush1.msra.mxu0 0.0
        %527 = vmatprep.subr.mxu0 0.0
        %528 = vmatpush1.msra.mxu0 0.0
        %529 = vmatprep.mubr.f32.mxu0 0.0
        %530 = vmatmul.mubr.f32.gmra.mrb[0].mxu0 %v454
        %v531 = vpop.f32.mrb[0].mxu0
        %v532 = vadd.f32 %v435, %v531
        %v533 = vpop.f32.mrb[0].mxu0
        %534 = vmatprep.mubr.f32.mxu0 0.0
        %535 = vmatmul.mubr.f32.gmra.mrb[0].mxu0 %v457
        %v536 = vpop.f32.mrb[0].mxu0
        %v537 = vadd.f32 %v440, %v536
        %v538 = vpop.f32.mrb[0].mxu0
        %539 = vmatprep.mubr.f32.mxu0 0.0
        %540 = vmatmul.mubr.f32.gmra.mrb[0].mxu0 %v460
        %v541 = vpop.f32.mrb[0].mxu0
        %v542 = vadd.f32 %v445, %v541
        %v543 = vpop.f32.mrb[0].mxu0
        %544 = vmatprep.mubr.f32.mxu0 0.0
        %545 = vmatmul.mubr.f32.gmra.mrb[0].mxu0 %v463
        %v546 = vpop.f32.mrb[0].mxu0
        %v547 = vadd.f32 %v450, %v546
        %v548 = vpop.f32.mrb[0].mxu0
        %549 = vdwg.mxu0
        %v550 = vld [vmem:[%s320] sm:$0x77]
        %v551 = vld [vmem:[%s320 + $0x8] sm:$0x77]
        %v552 = vld [vmem:[%s320 + $0x10] sm:$0x77]
        %v553 = vld [vmem:[%s320 + $0x18] sm:$0x77]
        %v554 = vld [vmem:[%s320 + $0x20] sm:$0x77]
        %v555 = vld [vmem:[%s320 + $0x28] sm:$0x77]
        %v556 = vld [vmem:[%s320 + $0x30] sm:$0x77]
        %v557 = vld [vmem:[%s320 + $0x38] sm:$0x77]
        %v558 = vld [vmem:[%s6] sm:$0xff]
        %v559 = vld [vmem:[%s6 + $0x8] sm:$0xff]
        %v560 = vld [vmem:[%s6 + $0x10] sm:$0xff]
        %v561 = vld [vmem:[%s6 + $0x18] sm:$0xff]
        %v562 = vld [vmem:[%s6 + $0x20] sm:$0xff]
        %v563 = vld [vmem:[%s6 + $0x28] sm:$0xff]
        %v564 = vld [vmem:[%s6 + $0x30] sm:$0xff]
        %v565 = vld [vmem:[%s6 + $0x38] sm:$0xff]
        %v566 = vld [vmem:[%s6 + $0x40] sm:$0xff]
        %v567 = vld [vmem:[%s6 + $0x48] sm:$0xff]
        %v568 = vld [vmem:[%s6 + $0x50] sm:$0xff]
        %v569 = vld [vmem:[%s6 + $0x58] sm:$0xff]
        %v578 = vcombine.high %v550, %v550
        %v579 = vcombine.high %v551, %v551
        %v580 = vcombine.high %v552, %v552
        %v581 = vcombine.high %v553, %v553
        %v582 = vcombine.high %v554, %v554
        %v583 = vcombine.high %v555, %v555
        %v584 = vcombine.high %v556, %v556
        %v585 = vcombine.high %v557, %v557
        %v587 = vsel %vm336, %v558, 0
        %v590 = vsel %vm336, %v559, 0
        %v593 = vsel %vm336, %v560, 0
        %v596 = vsel %vm336, %v561, 0
        %v599 = vsel %vm336, %v562, 0
        %v602 = vsel %vm336, %v563, 0
        %v605 = vsel %vm336, %v564, 0
        %v608 = vsel %vm336, %v565, 0
        %v611 = vsel %vm336, %v566, 0
        %v614 = vsel %vm336, %v567, 0
        %v617 = vsel %vm336, %v568, 0
        %v620 = vsel %vm336, %v569, 0
        %v622 = vsel %vm343, %v550, 0
        %v624 = vsel %vm343, %v578, 0
        %v626 = vsel %vm343, %v551, 0
        %v628 = vsel %vm343, %v579, 0
        %v630 = vsel %vm343, %v552, 0
        %v632 = vsel %vm343, %v580, 0
        %v634 = vsel %vm343, %v553, 0
        %v636 = vsel %vm343, %v581, 0
        %v638 = vsel %vm343, %v554, 0
        %v640 = vsel %vm343, %v582, 0
        %v642 = vsel %vm343, %v555, 0
        %v644 = vsel %vm343, %v583, 0
        %v646 = vsel %vm343, %v556, 0
        %v648 = vsel %vm343, %v584, 0
        %v650 = vsel %vm343, %v557, 0
        %v652 = vsel %vm343, %v585, 0
        %654 = vmatprep.subr.mxu0 %v624
        %655 = vmatpush1.msra.mxu0 %v622
        %656 = vmatprep.subr.mxu0 0.0
        %657 = vmatpush1.msra.mxu0 0.0
        %658 = vmatprep.subr.mxu0 0.0
        %659 = vmatpush1.msra.mxu0 0.0
        %660 = vmatprep.subr.mxu0 0.0
        %661 = vmatpush1.msra.mxu0 0.0
        %662 = vmatprep.subr.mxu0 0.0
        %663 = vmatpush1.msra.mxu0 0.0
        %664 = vmatprep.subr.mxu0 0.0
        %665 = vmatpush1.msra.mxu0 0.0
        %666 = vmatprep.subr.mxu0 0.0
        %667 = vmatpush1.msra.mxu0 0.0
        %668 = vmatprep.subr.mxu0 0.0
        %669 = vmatpush1.msra.mxu0 0.0
        %670 = vmatprep.subr.mxu0 0.0
        %671 = vmatpush1.msra.mxu0 0.0
        %672 = vmatprep.subr.mxu0 0.0
        %673 = vmatpush1.msra.mxu0 0.0
        %674 = vmatprep.subr.mxu0 0.0
        %675 = vmatpush1.msra.mxu0 0.0
        %676 = vmatprep.subr.mxu0 0.0
        %677 = vmatpush1.msra.mxu0 0.0
        %678 = vmatprep.subr.mxu0 0.0
        %679 = vmatpush1.msra.mxu0 0.0
        %680 = vmatprep.subr.mxu0 0.0
        %681 = vmatpush1.msra.mxu0 0.0
        %682 = vmatprep.subr.mxu0 0.0
        %683 = vmatpush1.msra.mxu0 0.0
        %684 = vmatprep.subr.mxu0 0.0
        %685 = vmatpush1.msra.mxu0 0.0
        %686 = vmatprep.subr.mxu0 0.0
        %687 = vmatpush1.msra.mxu0 0.0
        %688 = vmatprep.subr.mxu0 0.0
        %689 = vmatpush1.msra.mxu0 0.0
        %690 = vmatprep.subr.mxu0 0.0
        %691 = vmatpush1.msra.mxu0 0.0
        %692 = vmatprep.subr.mxu0 0.0
        %693 = vmatpush1.msra.mxu0 0.0
        %694 = vmatprep.subr.mxu0 0.0
        %695 = vmatpush1.msra.mxu0 0.0
        %696 = vmatprep.subr.mxu0 0.0
        %697 = vmatpush1.msra.mxu0 0.0
        %698 = vmatprep.subr.mxu0 0.0
        %699 = vmatpush1.msra.mxu0 0.0
        %700 = vmatprep.subr.mxu0 0.0
        %701 = vmatpush1.msra.mxu0 0.0
        %702 = vmatprep.subr.mxu0 0.0
        %703 = vmatpush1.msra.mxu0 0.0
        %704 = vmatprep.subr.mxu0 0.0
        %705 = vmatpush1.msra.mxu0 0.0
        %706 = vmatprep.subr.mxu0 0.0
        %707 = vmatpush1.msra.mxu0 0.0
        %708 = vmatprep.subr.mxu0 0.0
        %709 = vmatpush1.msra.mxu0 0.0
        %710 = vmatprep.subr.mxu0 0.0
        %711 = vmatpush1.msra.mxu0 0.0
        %712 = vmatprep.subr.mxu0 0.0
        %713 = vmatpush1.msra.mxu0 0.0
        %714 = vmatprep.subr.mxu0 0.0
        %715 = vmatpush1.msra.mxu0 0.0
        %716 = vmatprep.subr.mxu0 0.0
        %717 = vmatpush1.msra.mxu0 0.0
        %718 = vmatprep.mubr.f32.mxu0 0.0
        %719 = vmatmul.mubr.f32.gmra.mrb[0].mxu0 %v587
        %v720 = vpop.f32.mrb[0].mxu0
        %v721 = vadd.f32 0.0, %v720
        %v722 = vpop.f32.mrb[0].mxu0
        %v723 = vadd.f32 0.0, %v722
        %724 = vmatprep.mubr.f32.mxu0 0.0
        %725 = vmatmul.mubr.f32.gmra.mrb[0].mxu0 %v590
        %v726 = vpop.f32.mrb[0].mxu0
        %v727 = vadd.f32 0.0, %v726
        %v728 = vpop.f32.mrb[0].mxu0
        %v729 = vadd.f32 0.0, %v728
        %730 = vmatprep.mubr.f32.mxu0 0.0
        %731 = vmatmul.mubr.f32.gmra.mrb[0].mxu0 %v593
        %v732 = vpop.f32.mrb[0].mxu0
        %v733 = vadd.f32 0.0, %v732
        %v734 = vpop.f32.mrb[0].mxu0
        %v735 = vadd.f32 0.0, %v734
        %736 = vmatprep.mubr.f32.mxu0 0.0
        %737 = vmatmul.mubr.f32.gmra.mrb[0].mxu0 %v596
        %v738 = vpop.f32.mrb[0].mxu0
        %v739 = vadd.f32 0.0, %v738
        %v740 = vpop.f32.mrb[0].mxu0
        %v741 = vadd.f32 0.0, %v740
        %742 = vmatprep.mubr.f32.mxu0 0.0
        %743 = vmatmul.mubr.f32.gmra.mrb[0].mxu0 %v599
        %v744 = vpop.f32.mrb[0].mxu0
        %v745 = vadd.f32 0.0, %v744
        %v746 = vpop.f32.mrb[0].mxu0
        %v747 = vadd.f32 0.0, %v746
        %748 = vmatprep.mubr.f32.mxu0 0.0
        %749 = vmatmul.mubr.f32.gmra.mrb[0].mxu0 %v602
        %v750 = vpop.f32.mrb[0].mxu0
        %v751 = vadd.f32 0.0, %v750
        %v752 = vpop.f32.mrb[0].mxu0
        %v753 = vadd.f32 0.0, %v752
        %754 = vmatprep.mubr.f32.mxu0 0.0
        %755 = vmatmul.mubr.f32.gmra.mrb[0].mxu0 %v605
        %v756 = vpop.f32.mrb[0].mxu0
        %v757 = vadd.f32 0.0, %v756
        %v758 = vpop.f32.mrb[0].mxu0
        %v759 = vadd.f32 0.0, %v758
        %760 = vmatprep.mubr.f32.mxu0 0.0
        %761 = vmatmul.mubr.f32.gmra.mrb[0].mxu0 %v608
        %v762 = vpop.f32.mrb[0].mxu0
        %v763 = vadd.f32 0.0, %v762
        %v764 = vpop.f32.mrb[0].mxu0
        %v765 = vadd.f32 0.0, %v764
        %766 = vmatprep.mubr.f32.mxu0 0.0
        %767 = vmatmul.mubr.f32.gmra.mrb[0].mxu0 %v611
        %v768 = vpop.f32.mrb[0].mxu0
        %v769 = vpop.f32.mrb[0].mxu0
        %v770 = vadd.f32 0.0, %v769
        %771 = vmatprep.mubr.f32.mxu0 0.0
        %772 = vmatmul.mubr.f32.gmra.mrb[0].mxu0 %v614
        %v773 = vpop.f32.mrb[0].mxu0
        %v774 = vpop.f32.mrb[0].mxu0
        %v775 = vadd.f32 0.0, %v774
        %776 = vmatprep.mubr.f32.mxu0 0.0
        %777 = vmatmul.mubr.f32.gmra.mrb[0].mxu0 %v617
        %v778 = vpop.f32.mrb[0].mxu0
        %v779 = vpop.f32.mrb[0].mxu0
        %v780 = vadd.f32 0.0, %v779
        %781 = vmatprep.mubr.f32.mxu0 0.0
        %782 = vmatmul.mubr.f32.gmra.mrb[0].mxu0 %v620
        %v783 = vpop.f32.mrb[0].mxu0
        %v784 = vpop.f32.mrb[0].mxu0
        %v785 = vadd.f32 0.0, %v784
        %786 = vdwg.mxu0
        %787 = vmatprep.subr.mxu0 %v628
        %788 = vmatpush1.msra.mxu0 %v626
        %789 = vmatprep.subr.mxu0 0.0
        %790 = vmatpush1.msra.mxu0 0.0
        %791 = vmatprep.subr.mxu0 0.0
        %792 = vmatpush1.msra.mxu0 0.0
        %793 = vmatprep.subr.mxu0 0.0
        %794 = vmatpush1.msra.mxu0 0.0
        %795 = vmatprep.subr.mxu0 0.0
        %796 = vmatpush1.msra.mxu0 0.0
        %797 = vmatprep.subr.mxu0 0.0
        %798 = vmatpush1.msra.mxu0 0.0
        %799 = vmatprep.subr.mxu0 0.0
        %800 = vmatpush1.msra.mxu0 0.0
        %801 = vmatprep.subr.mxu0 0.0
        %802 = vmatpush1.msra.mxu0 0.0
        %803 = vmatprep.subr.mxu0 0.0
        %804 = vmatpush1.msra.mxu0 0.0
        %805 = vmatprep.subr.mxu0 0.0
        %806 = vmatpush1.msra.mxu0 0.0
        %807 = vmatprep.subr.mxu0 0.0
        %808 = vmatpush1.msra.mxu0 0.0
        %809 = vmatprep.subr.mxu0 0.0
        %810 = vmatpush1.msra.mxu0 0.0
        %811 = vmatprep.subr.mxu0 0.0
        %812 = vmatpush1.msra.mxu0 0.0
        %813 = vmatprep.subr.mxu0 0.0
        %814 = vmatpush1.msra.mxu0 0.0
        %815 = vmatprep.subr.mxu0 0.0
        %816 = vmatpush1.msra.mxu0 0.0
        %817 = vmatprep.subr.mxu0 0.0
        %818 = vmatpush1.msra.mxu0 0.0
        %819 = vmatprep.subr.mxu0 0.0
        %820 = vmatpush1.msra.mxu0 0.0
        %821 = vmatprep.subr.mxu0 0.0
        %822 = vmatpush1.msra.mxu0 0.0
        %823 = vmatprep.subr.mxu0 0.0
        %824 = vmatpush1.msra.mxu0 0.0
        %825 = vmatprep.subr.mxu0 0.0
        %826 = vmatpush1.msra.mxu0 0.0
        %827 = vmatprep.subr.mxu0 0.0
        %828 = vmatpush1.msra.mxu0 0.0
        %829 = vmatprep.subr.mxu0 0.0
        %830 = vmatpush1.msra.mxu0 0.0
        %831 = vmatprep.subr.mxu0 0.0
        %832 = vmatpush1.msra.mxu0 0.0
        %833 = vmatprep.subr.mxu0 0.0
        %834 = vmatpush1.msra.mxu0 0.0
        %835 = vmatprep.subr.mxu0 0.0
        %836 = vmatpush1.msra.mxu0 0.0
        %837 = vmatprep.subr.mxu0 0.0
        %838 = vmatpush1.msra.mxu0 0.0
        %839 = vmatprep.subr.mxu0 0.0
        %840 = vmatpush1.msra.mxu0 0.0
        %841 = vmatprep.subr.mxu0 0.0
        %842 = vmatpush1.msra.mxu0 0.0
        %843 = vmatprep.subr.mxu0 0.0
        %844 = vmatpush1.msra.mxu0 0.0
        %845 = vmatprep.subr.mxu0 0.0
        %846 = vmatpush1.msra.mxu0 0.0
        %847 = vmatprep.subr.mxu0 0.0
        %848 = vmatpush1.msra.mxu0 0.0
        %849 = vmatprep.subr.mxu0 0.0
        %850 = vmatpush1.msra.mxu0 0.0
        %851 = vmatprep.mubr.f32.mxu0 0.0
        %852 = vmatmul.mubr.f32.gmra.mrb[0].mxu0 %v587
        %v853 = vpop.f32.mrb[0].mxu0
        %v854 = vadd.f32 0.0, %v853
        %v855 = vpop.f32.mrb[0].mxu0
        %v856 = vadd.f32 0.0, %v855
        %857 = vmatprep.mubr.f32.mxu0 0.0
        %858 = vmatmul.mubr.f32.gmra.mrb[0].mxu0 %v590
        %v859 = vpop.f32.mrb[0].mxu0
        %v860 = vadd.f32 0.0, %v859
        %v861 = vpop.f32.mrb[0].mxu0
        %v862 = vadd.f32 0.0, %v861
        %863 = vmatprep.mubr.f32.mxu0 0.0
        %864 = vmatmul.mubr.f32.gmra.mrb[0].mxu0 %v593
        %v865 = vpop.f32.mrb[0].mxu0
        %v866 = vadd.f32 0.0, %v865
        %v867 = vpop.f32.mrb[0].mxu0
        %v868 = vadd.f32 0.0, %v867
        %869 = vmatprep.mubr.f32.mxu0 0.0
        %870 = vmatmul.mubr.f32.gmra.mrb[0].mxu0 %v596
        %v871 = vpop.f32.mrb[0].mxu0
        %v872 = vadd.f32 0.0, %v871
        %v873 = vpop.f32.mrb[0].mxu0
        %v874 = vadd.f32 0.0, %v873
        %875 = vmatprep.mubr.f32.mxu0 0.0
        %876 = vmatmul.mubr.f32.gmra.mrb[0].mxu0 %v599
        %v877 = vpop.f32.mrb[0].mxu0
        %v878 = vadd.f32 0.0, %v877
        %v879 = vpop.f32.mrb[0].mxu0
        %v880 = vadd.f32 0.0, %v879
        %881 = vmatprep.mubr.f32.mxu0 0.0
        %882 = vmatmul.mubr.f32.gmra.mrb[0].mxu0 %v602
        %v883 = vpop.f32.mrb[0].mxu0
        %v884 = vadd.f32 0.0, %v883
        %v885 = vpop.f32.mrb[0].mxu0
        %v886 = vadd.f32 0.0, %v885
        %887 = vmatprep.mubr.f32.mxu0 0.0
        %888 = vmatmul.mubr.f32.gmra.mrb[0].mxu0 %v605
        %v889 = vpop.f32.mrb[0].mxu0
        %v890 = vadd.f32 0.0, %v889
        %v891 = vpop.f32.mrb[0].mxu0
        %v892 = vadd.f32 0.0, %v891
        %893 = vmatprep.mubr.f32.mxu0 0.0
        %894 = vmatmul.mubr.f32.gmra.mrb[0].mxu0 %v608
        %v895 = vpop.f32.mrb[0].mxu0
        %v896 = vadd.f32 0.0, %v895
        %v897 = vpop.f32.mrb[0].mxu0
        %v898 = vadd.f32 0.0, %v897
        %899 = vmatprep.mubr.f32.mxu0 0.0
        %900 = vmatmul.mubr.f32.gmra.mrb[0].mxu0 %v611
        %v901 = vpop.f32.mrb[0].mxu0
        %v902 = vadd.f32 0.0, %v901
        %v903 = vpop.f32.mrb[0].mxu0
        %v904 = vadd.f32 0.0, %v903
        %905 = vmatprep.mubr.f32.mxu0 0.0
        %906 = vmatmul.mubr.f32.gmra.mrb[0].mxu0 %v614
        %v907 = vpop.f32.mrb[0].mxu0
        %v908 = vadd.f32 0.0, %v907
        %v909 = vpop.f32.mrb[0].mxu0
        %v910 = vadd.f32 0.0, %v909
        %911 = vmatprep.mubr.f32.mxu0 0.0
        %912 = vmatmul.mubr.f32.gmra.mrb[0].mxu0 %v617
        %v913 = vpop.f32.mrb[0].mxu0
        %v914 = vadd.f32 0.0, %v913
        %v915 = vpop.f32.mrb[0].mxu0
        %v916 = vadd.f32 0.0, %v915
        %917 = vmatprep.mubr.f32.mxu0 0.0
        %918 = vmatmul.mubr.f32.gmra.mrb[0].mxu0 %v620
        %v919 = vpop.f32.mrb[0].mxu0
        %v920 = vadd.f32 0.0, %v919
        %v921 = vpop.f32.mrb[0].mxu0
        %v922 = vadd.f32 0.0, %v921
        %923 = vdwg.mxu0
        %924 = vmatprep.subr.mxu0 %v632
        %925 = vmatpush1.msra.mxu0 %v630
        %926 = vmatprep.subr.mxu0 0.0
        %927 = vmatpush1.msra.mxu0 0.0
        %928 = vmatprep.subr.mxu0 0.0
        %929 = vmatpush1.msra.mxu0 0.0
        %930 = vmatprep.subr.mxu0 0.0
        %931 = vmatpush1.msra.mxu0 0.0
        %932 = vmatprep.subr.mxu0 0.0
        %933 = vmatpush1.msra.mxu0 0.0
        %934 = vmatprep.subr.mxu0 0.0
        %935 = vmatpush1.msra.mxu0 0.0
        %936 = vmatprep.subr.mxu0 0.0
        %937 = vmatpush1.msra.mxu0 0.0
        %938 = vmatprep.subr.mxu0 0.0
        %939 = vmatpush1.msra.mxu0 0.0
        %940 = vmatprep.subr.mxu0 0.0
        %941 = vmatpush1.msra.mxu0 0.0
        %942 = vmatprep.subr.mxu0 0.0
        %943 = vmatpush1.msra.mxu0 0.0
        %944 = vmatprep.subr.mxu0 0.0
        %945 = vmatpush1.msra.mxu0 0.0
        %946 = vmatprep.subr.mxu0 0.0
        %947 = vmatpush1.msra.mxu0 0.0
        %948 = vmatprep.subr.mxu0 0.0
        %949 = vmatpush1.msra.mxu0 0.0
        %950 = vmatprep.subr.mxu0 0.0
        %951 = vmatpush1.msra.mxu0 0.0
        %952 = vmatprep.subr.mxu0 0.0
        %953 = vmatpush1.msra.mxu0 0.0
        %954 = vmatprep.subr.mxu0 0.0
        %955 = vmatpush1.msra.mxu0 0.0
        %956 = vmatprep.subr.mxu0 0.0
        %957 = vmatpush1.msra.mxu0 0.0
        %958 = vmatprep.subr.mxu0 0.0
        %959 = vmatpush1.msra.mxu0 0.0
        %960 = vmatprep.subr.mxu0 0.0
        %961 = vmatpush1.msra.mxu0 0.0
        %962 = vmatprep.subr.mxu0 0.0
        %963 = vmatpush1.msra.mxu0 0.0
        %964 = vmatprep.subr.mxu0 0.0
        %965 = vmatpush1.msra.mxu0 0.0
        %966 = vmatprep.subr.mxu0 0.0
        %967 = vmatpush1.msra.mxu0 0.0
        %968 = vmatprep.subr.mxu0 0.0
        %969 = vmatpush1.msra.mxu0 0.0
        %970 = vmatprep.subr.mxu0 0.0
        %971 = vmatpush1.msra.mxu0 0.0
        %972 = vmatprep.subr.mxu0 0.0
        %973 = vmatpush1.msra.mxu0 0.0
        %974 = vmatprep.subr.mxu0 0.0
        %975 = vmatpush1.msra.mxu0 0.0
        %976 = vmatprep.subr.mxu0 0.0
        %977 = vmatpush1.msra.mxu0 0.0
        %978 = vmatprep.subr.mxu0 0.0
        %979 = vmatpush1.msra.mxu0 0.0
        %980 = vmatprep.subr.mxu0 0.0
        %981 = vmatpush1.msra.mxu0 0.0
        %982 = vmatprep.subr.mxu0 0.0
        %983 = vmatpush1.msra.mxu0 0.0
        %984 = vmatprep.subr.mxu0 0.0
        %985 = vmatpush1.msra.mxu0 0.0
        %986 = vmatprep.subr.mxu0 0.0
        %987 = vmatpush1.msra.mxu0 0.0
        %988 = vmatprep.mubr.f32.mxu0 0.0
        %989 = vmatmul.mubr.f32.gmra.mrb[0].mxu0 %v587
        %v990 = vpop.f32.mrb[0].mxu0
        %v991 = vadd.f32 0.0, %v990
        %v992 = vpop.f32.mrb[0].mxu0
        %v993 = vadd.f32 0.0, %v992
        %994 = vmatprep.mubr.f32.mxu0 0.0
        %995 = vmatmul.mubr.f32.gmra.mrb[0].mxu0 %v590
        %v996 = vpop.f32.mrb[0].mxu0
        %v997 = vadd.f32 0.0, %v996
        %v998 = vpop.f32.mrb[0].mxu0
        %v999 = vadd.f32 0.0, %v998
        %1000 = vmatprep.mubr.f32.mxu0 0.0
        %1001 = vmatmul.mubr.f32.gmra.mrb[0].mxu0 %v593
        %v1002 = vpop.f32.mrb[0].mxu0
        %v1003 = vadd.f32 0.0, %v1002
        %v1004 = vpop.f32.mrb[0].mxu0
        %v1005 = vadd.f32 0.0, %v1004
        %1006 = vmatprep.mubr.f32.mxu0 0.0
        %1007 = vmatmul.mubr.f32.gmra.mrb[0].mxu0 %v596
        %v1008 = vpop.f32.mrb[0].mxu0
        %v1009 = vadd.f32 0.0, %v1008
        %v1010 = vpop.f32.mrb[0].mxu0
        %v1011 = vadd.f32 0.0, %v1010
        %1012 = vmatprep.mubr.f32.mxu0 0.0
        %1013 = vmatmul.mubr.f32.gmra.mrb[0].mxu0 %v599
        %v1014 = vpop.f32.mrb[0].mxu0
        %v1015 = vadd.f32 0.0, %v1014
        %v1016 = vpop.f32.mrb[0].mxu0
        %v1017 = vadd.f32 0.0, %v1016
        %1018 = vmatprep.mubr.f32.mxu0 0.0
        %1019 = vmatmul.mubr.f32.gmra.mrb[0].mxu0 %v602
        %v1020 = vpop.f32.mrb[0].mxu0
        %v1021 = vadd.f32 0.0, %v1020
        %v1022 = vpop.f32.mrb[0].mxu0
        %v1023 = vadd.f32 0.0, %v1022
        %1024 = vmatprep.mubr.f32.mxu0 0.0
        %1025 = vmatmul.mubr.f32.gmra.mrb[0].mxu0 %v605
        %v1026 = vpop.f32.mrb[0].mxu0
        %v1027 = vadd.f32 0.0, %v1026
        %v1028 = vpop.f32.mrb[0].mxu0
        %v1029 = vadd.f32 0.0, %v1028
        %1030 = vmatprep.mubr.f32.mxu0 0.0
        %1031 = vmatmul.mubr.f32.gmra.mrb[0].mxu0 %v608
        %v1032 = vpop.f32.mrb[0].mxu0
        %v1033 = vadd.f32 0.0, %v1032
        %v1034 = vpop.f32.mrb[0].mxu0
        %v1035 = vadd.f32 0.0, %v1034
        %1036 = vmatprep.mubr.f32.mxu0 0.0
        %1037 = vmatmul.mubr.f32.gmra.mrb[0].mxu0 %v611
        %v1038 = vpop.f32.mrb[0].mxu0
        %v1039 = vadd.f32 0.0, %v1038
        %v1040 = vpop.f32.mrb[0].mxu0
        %v1041 = vadd.f32 0.0, %v1040
        %1042 = vmatprep.mubr.f32.mxu0 0.0
        %1043 = vmatmul.mubr.f32.gmra.mrb[0].mxu0 %v614
        %v1044 = vpop.f32.mrb[0].mxu0
        %v1045 = vadd.f32 0.0, %v1044
        %v1046 = vpop.f32.mrb[0].mxu0
        %v1047 = vadd.f32 0.0, %v1046
        %1048 = vmatprep.mubr.f32.mxu0 0.0
        %1049 = vmatmul.mubr.f32.gmra.mrb[0].mxu0 %v617
        %v1050 = vpop.f32.mrb[0].mxu0
        %v1051 = vadd.f32 0.0, %v1050
        %v1052 = vpop.f32.mrb[0].mxu0
        %v1053 = vadd.f32 0.0, %v1052
        %1054 = vmatprep.mubr.f32.mxu0 0.0
        %1055 = vmatmul.mubr.f32.gmra.mrb[0].mxu0 %v620
        %v1056 = vpop.f32.mrb[0].mxu0
        %v1057 = vadd.f32 0.0, %v1056
        %v1058 = vpop.f32.mrb[0].mxu0
        %v1059 = vadd.f32 0.0, %v1058
        %1060 = vdwg.mxu0
        %1061 = vmatprep.subr.mxu0 %v636
        %1062 = vmatpush1.msra.mxu0 %v634
        %1063 = vmatprep.subr.mxu0 0.0
        %1064 = vmatpush1.msra.mxu0 0.0
        %1065 = vmatprep.subr.mxu0 0.0
        %1066 = vmatpush1.msra.mxu0 0.0
        %1067 = vmatprep.subr.mxu0 0.0
        %1068 = vmatpush1.msra.mxu0 0.0
        %1069 = vmatprep.subr.mxu0 0.0
        %1070 = vmatpush1.msra.mxu0 0.0
        %1071 = vmatprep.subr.mxu0 0.0
        %1072 = vmatpush1.msra.mxu0 0.0
        %1073 = vmatprep.subr.mxu0 0.0
        %1074 = vmatpush1.msra.mxu0 0.0
        %1075 = vmatprep.subr.mxu0 0.0
        %1076 = vmatpush1.msra.mxu0 0.0
        %1077 = vmatprep.subr.mxu0 0.0
        %1078 = vmatpush1.msra.mxu0 0.0
        %1079 = vmatprep.subr.mxu0 0.0
        %1080 = vmatpush1.msra.mxu0 0.0
        %1081 = vmatprep.subr.mxu0 0.0
        %1082 = vmatpush1.msra.mxu0 0.0
        %1083 = vmatprep.subr.mxu0 0.0
        %1084 = vmatpush1.msra.mxu0 0.0
        %1085 = vmatprep.subr.mxu0 0.0
        %1086 = vmatpush1.msra.mxu0 0.0
        %1087 = vmatprep.subr.mxu0 0.0
        %1088 = vmatpush1.msra.mxu0 0.0
        %1089 = vmatprep.subr.mxu0 0.0
        %1090 = vmatpush1.msra.mxu0 0.0
        %1091 = vmatprep.subr.mxu0 0.0
        %1092 = vmatpush1.msra.mxu0 0.0
        %1093 = vmatprep.subr.mxu0 0.0
        %1094 = vmatpush1.msra.mxu0 0.0
        %1095 = vmatprep.subr.mxu0 0.0
        %1096 = vmatpush1.msra.mxu0 0.0
        %1097 = vmatprep.subr.mxu0 0.0
        %1098 = vmatpush1.msra.mxu0 0.0
        %1099 = vmatprep.subr.mxu0 0.0
        %1100 = vmatpush1.msra.mxu0 0.0
        %1101 = vmatprep.subr.mxu0 0.0
        %1102 = vmatpush1.msra.mxu0 0.0
        %1103 = vmatprep.subr.mxu0 0.0
        %1104 = vmatpush1.msra.mxu0 0.0
        %1105 = vmatprep.subr.mxu0 0.0
        %1106 = vmatpush1.msra.mxu0 0.0
        %1107 = vmatprep.subr.mxu0 0.0
        %1108 = vmatpush1.msra.mxu0 0.0
        %1109 = vmatprep.subr.mxu0 0.0
        %1110 = vmatpush1.msra.mxu0 0.0
        %1111 = vmatprep.subr.mxu0 0.0
        %1112 = vmatpush1.msra.mxu0 0.0
        %1113 = vmatprep.subr.mxu0 0.0
        %1114 = vmatpush1.msra.mxu0 0.0
        %1115 = vmatprep.subr.mxu0 0.0
        %1116 = vmatpush1.msra.mxu0 0.0
        %1117 = vmatprep.subr.mxu0 0.0
        %1118 = vmatpush1.msra.mxu0 0.0
        %1119 = vmatprep.subr.mxu0 0.0
        %1120 = vmatpush1.msra.mxu0 0.0
        %1121 = vmatprep.subr.mxu0 0.0
        %1122 = vmatpush1.msra.mxu0 0.0
        %1123 = vmatprep.subr.mxu0 0.0
        %1124 = vmatpush1.msra.mxu0 0.0
        %1125 = vmatprep.mubr.f32.mxu0 0.0
        %1126 = vmatmul.mubr.f32.gmra.mrb[0].mxu0 %v587
        %v1127 = vpop.f32.mrb[0].mxu0
        %v1128 = vadd.f32 0.0, %v1127
        %v1129 = vpop.f32.mrb[0].mxu0
        %v1130 = vadd.f32 0.0, %v1129
        %1131 = vmatprep.mubr.f32.mxu0 0.0
        %1132 = vmatmul.mubr.f32.gmra.mrb[0].mxu0 %v590
        %v1133 = vpop.f32.mrb[0].mxu0
        %v1134 = vadd.f32 0.0, %v1133
        %v1135 = vpop.f32.mrb[0].mxu0
        %v1136 = vadd.f32 0.0, %v1135
        %1137 = vmatprep.mubr.f32.mxu0 0.0
        %1138 = vmatmul.mubr.f32.gmra.mrb[0].mxu0 %v593
        %v1139 = vpop.f32.mrb[0].mxu0
        %v1140 = vadd.f32 0.0, %v1139
        %v1141 = vpop.f32.mrb[0].mxu0
        %v1142 = vadd.f32 0.0, %v1141
        %1143 = vmatprep.mubr.f32.mxu0 0.0
        %1144 = vmatmul.mubr.f32.gmra.mrb[0].mxu0 %v596
        %v1145 = vpop.f32.mrb[0].mxu0
        %v1146 = vadd.f32 0.0, %v1145
        %v1147 = vpop.f32.mrb[0].mxu0
        %v1148 = vadd.f32 0.0, %v1147
        %1149 = vmatprep.mubr.f32.mxu0 0.0
        %1150 = vmatmul.mubr.f32.gmra.mrb[0].mxu0 %v599
        %v1151 = vpop.f32.mrb[0].mxu0
        %v1152 = vadd.f32 0.0, %v1151
        %v1153 = vpop.f32.mrb[0].mxu0
        %v1154 = vadd.f32 0.0, %v1153
        %1155 = vmatprep.mubr.f32.mxu0 0.0
        %1156 = vmatmul.mubr.f32.gmra.mrb[0].mxu0 %v602
        %v1157 = vpop.f32.mrb[0].mxu0
        %v1158 = vadd.f32 0.0, %v1157
        %v1159 = vpop.f32.mrb[0].mxu0
        %v1160 = vadd.f32 0.0, %v1159
        %1161 = vmatprep.mubr.f32.mxu0 0.0
        %1162 = vmatmul.mubr.f32.gmra.mrb[0].mxu0 %v605
        %v1163 = vpop.f32.mrb[0].mxu0
        %v1164 = vadd.f32 0.0, %v1163
        %v1165 = vpop.f32.mrb[0].mxu0
        %v1166 = vadd.f32 0.0, %v1165
        %1167 = vmatprep.mubr.f32.mxu0 0.0
        %1168 = vmatmul.mubr.f32.gmra.mrb[0].mxu0 %v608
        %v1169 = vpop.f32.mrb[0].mxu0
        %v1170 = vadd.f32 0.0, %v1169
        %v1171 = vpop.f32.mrb[0].mxu0
        %v1172 = vadd.f32 0.0, %v1171
        %1173 = vmatprep.mubr.f32.mxu0 0.0
        %1174 = vmatmul.mubr.f32.gmra.mrb[0].mxu0 %v611
        %v1175 = vpop.f32.mrb[0].mxu0
        %v1176 = vadd.f32 0.0, %v1175
        %v1177 = vpop.f32.mrb[0].mxu0
        %v1178 = vadd.f32 0.0, %v1177
        %1179 = vmatprep.mubr.f32.mxu0 0.0
        %1180 = vmatmul.mubr.f32.gmra.mrb[0].mxu0 %v614
        %v1181 = vpop.f32.mrb[0].mxu0
        %v1182 = vadd.f32 0.0, %v1181
        %v1183 = vpop.f32.mrb[0].mxu0
        %v1184 = vadd.f32 0.0, %v1183
        %1185 = vmatprep.mubr.f32.mxu0 0.0
        %1186 = vmatmul.mubr.f32.gmra.mrb[0].mxu0 %v617
        %v1187 = vpop.f32.mrb[0].mxu0
        %v1188 = vadd.f32 0.0, %v1187
        %v1189 = vpop.f32.mrb[0].mxu0
        %v1190 = vadd.f32 0.0, %v1189
        %1191 = vmatprep.mubr.f32.mxu0 0.0
        %1192 = vmatmul.mubr.f32.gmra.mrb[0].mxu0 %v620
        %v1193 = vpop.f32.mrb[0].mxu0
        %v1194 = vadd.f32 0.0, %v1193
        %v1195 = vpop.f32.mrb[0].mxu0
        %v1196 = vadd.f32 0.0, %v1195
        %1197 = vdwg.mxu0
        %1198 = vmatprep.subr.mxu0 %v640
        %1199 = vmatpush1.msra.mxu0 %v638
        %1200 = vmatprep.subr.mxu0 0.0
        %1201 = vmatpush1.msra.mxu0 0.0
        %1202 = vmatprep.subr.mxu0 0.0
        %1203 = vmatpush1.msra.mxu0 0.0
        %1204 = vmatprep.subr.mxu0 0.0
        %1205 = vmatpush1.msra.mxu0 0.0
        %1206 = vmatprep.subr.mxu0 0.0
        %1207 = vmatpush1.msra.mxu0 0.0
        %1208 = vmatprep.subr.mxu0 0.0
        %1209 = vmatpush1.msra.mxu0 0.0
        %1210 = vmatprep.subr.mxu0 0.0
        %1211 = vmatpush1.msra.mxu0 0.0
        %1212 = vmatprep.subr.mxu0 0.0
        %1213 = vmatpush1.msra.mxu0 0.0
        %1214 = vmatprep.subr.mxu0 0.0
        %1215 = vmatpush1.msra.mxu0 0.0
        %1216 = vmatprep.subr.mxu0 0.0
        %1217 = vmatpush1.msra.mxu0 0.0
        %1218 = vmatprep.subr.mxu0 0.0
        %1219 = vmatpush1.msra.mxu0 0.0
        %1220 = vmatprep.subr.mxu0 0.0
        %1221 = vmatpush1.msra.mxu0 0.0
        %1222 = vmatprep.subr.mxu0 0.0
        %1223 = vmatpush1.msra.mxu0 0.0
        %1224 = vmatprep.subr.mxu0 0.0
        %1225 = vmatpush1.msra.mxu0 0.0
        %1226 = vmatprep.subr.mxu0 0.0
        %1227 = vmatpush1.msra.mxu0 0.0
        %1228 = vmatprep.subr.mxu0 0.0
        %1229 = vmatpush1.msra.mxu0 0.0
        %1230 = vmatprep.subr.mxu0 0.0
        %1231 = vmatpush1.msra.mxu0 0.0
        %1232 = vmatprep.subr.mxu0 0.0
        %1233 = vmatpush1.msra.mxu0 0.0
        %1234 = vmatprep.subr.mxu0 0.0
        %1235 = vmatpush1.msra.mxu0 0.0
        %1236 = vmatprep.subr.mxu0 0.0
        %1237 = vmatpush1.msra.mxu0 0.0
        %1238 = vmatprep.subr.mxu0 0.0
        %1239 = vmatpush1.msra.mxu0 0.0
        %1240 = vmatprep.subr.mxu0 0.0
        %1241 = vmatpush1.msra.mxu0 0.0
        %1242 = vmatprep.subr.mxu0 0.0
        %1243 = vmatpush1.msra.mxu0 0.0
        %1244 = vmatprep.subr.mxu0 0.0
        %1245 = vmatpush1.msra.mxu0 0.0
        %1246 = vmatprep.subr.mxu0 0.0
        %1247 = vmatpush1.msra.mxu0 0.0
        %1248 = vmatprep.subr.mxu0 0.0
        %1249 = vmatpush1.msra.mxu0 0.0
        %1250 = vmatprep.subr.mxu0 0.0
        %1251 = vmatpush1.msra.mxu0 0.0
        %1252 = vmatprep.subr.mxu0 0.0
        %1253 = vmatpush1.msra.mxu0 0.0
        %1254 = vmatprep.subr.mxu0 0.0
        %1255 = vmatpush1.msra.mxu0 0.0
        %1256 = vmatprep.subr.mxu0 0.0
        %1257 = vmatpush1.msra.mxu0 0.0
        %1258 = vmatprep.subr.mxu0 0.0
        %1259 = vmatpush1.msra.mxu0 0.0
        %1260 = vmatprep.subr.mxu0 0.0
        %1261 = vmatpush1.msra.mxu0 0.0
        %1262 = vmatprep.mubr.f32.mxu0 0.0
        %1263 = vmatmul.mubr.f32.gmra.mrb[0].mxu0 %v587
        %v1264 = vpop.f32.mrb[0].mxu0
        %v1265 = vadd.f32 0.0, %v1264
        %v1266 = vpop.f32.mrb[0].mxu0
        %v1267 = vadd.f32 0.0, %v1266
        %1268 = vmatprep.mubr.f32.mxu0 0.0
        %1269 = vmatmul.mubr.f32.gmra.mrb[0].mxu0 %v590
        %v1270 = vpop.f32.mrb[0].mxu0
        %v1271 = vadd.f32 0.0, %v1270
        %v1272 = vpop.f32.mrb[0].mxu0
        %v1273 = vadd.f32 0.0, %v1272
        %1274 = vmatprep.mubr.f32.mxu0 0.0
        %1275 = vmatmul.mubr.f32.gmra.mrb[0].mxu0 %v593
        %v1276 = vpop.f32.mrb[0].mxu0
        %v1277 = vadd.f32 0.0, %v1276
        %v1278 = vpop.f32.mrb[0].mxu0
        %v1279 = vadd.f32 0.0, %v1278
        %1280 = vmatprep.mubr.f32.mxu0 0.0
        %1281 = vmatmul.mubr.f32.gmra.mrb[0].mxu0 %v596
        %v1282 = vpop.f32.mrb[0].mxu0
        %v1283 = vadd.f32 0.0, %v1282
        %v1284 = vpop.f32.mrb[0].mxu0
        %v1285 = vadd.f32 0.0, %v1284
        %1286 = vmatprep.mubr.f32.mxu0 0.0
        %1287 = vmatmul.mubr.f32.gmra.mrb[0].mxu0 %v599
        %v1288 = vpop.f32.mrb[0].mxu0
        %v1289 = vadd.f32 0.0, %v1288
        %v1290 = vpop.f32.mrb[0].mxu0
        %v1291 = vadd.f32 0.0, %v1290
        %1292 = vmatprep.mubr.f32.mxu0 0.0
        %1293 = vmatmul.mubr.f32.gmra.mrb[0].mxu0 %v602
        %v1294 = vpop.f32.mrb[0].mxu0
        %v1295 = vadd.f32 0.0, %v1294
        %v1296 = vpop.f32.mrb[0].mxu0
        %v1297 = vadd.f32 0.0, %v1296
        %1298 = vmatprep.mubr.f32.mxu0 0.0
        %1299 = vmatmul.mubr.f32.gmra.mrb[0].mxu0 %v605
        %v1300 = vpop.f32.mrb[0].mxu0
        %v1301 = vadd.f32 0.0, %v1300
        %v1302 = vpop.f32.mrb[0].mxu0
        %v1303 = vadd.f32 0.0, %v1302
        %1304 = vmatprep.mubr.f32.mxu0 0.0
        %1305 = vmatmul.mubr.f32.gmra.mrb[0].mxu0 %v608
        %v1306 = vpop.f32.mrb[0].mxu0
        %v1307 = vadd.f32 0.0, %v1306
        %v1308 = vpop.f32.mrb[0].mxu0
        %v1309 = vadd.f32 0.0, %v1308
        %1310 = vmatprep.mubr.f32.mxu0 0.0
        %1311 = vmatmul.mubr.f32.gmra.mrb[0].mxu0 %v611
        %v1312 = vpop.f32.mrb[0].mxu0
        %v1313 = vadd.f32 0.0, %v1312
        %v1314 = vpop.f32.mrb[0].mxu0
        %v1315 = vadd.f32 0.0, %v1314
        %1316 = vmatprep.mubr.f32.mxu0 0.0
        %1317 = vmatmul.mubr.f32.gmra.mrb[0].mxu0 %v614
        %v1318 = vpop.f32.mrb[0].mxu0
        %v1319 = vadd.f32 0.0, %v1318
        %v1320 = vpop.f32.mrb[0].mxu0
        %v1321 = vadd.f32 0.0, %v1320
        %1322 = vmatprep.mubr.f32.mxu0 0.0
        %1323 = vmatmul.mubr.f32.gmra.mrb[0].mxu0 %v617
        %v1324 = vpop.f32.mrb[0].mxu0
        %v1325 = vadd.f32 0.0, %v1324
        %v1326 = vpop.f32.mrb[0].mxu0
        %v1327 = vadd.f32 0.0, %v1326
        %1328 = vmatprep.mubr.f32.mxu0 0.0
        %1329 = vmatmul.mubr.f32.gmra.mrb[0].mxu0 %v620
        %v1330 = vpop.f32.mrb[0].mxu0
        %v1331 = vadd.f32 0.0, %v1330
        %v1332 = vpop.f32.mrb[0].mxu0
        %v1333 = vadd.f32 0.0, %v1332
        %1334 = vdwg.mxu0
        %1335 = vmatprep.subr.mxu0 %v644
        %1336 = vmatpush1.msra.mxu0 %v642
        %1337 = vmatprep.subr.mxu0 0.0
        %1338 = vmatpush1.msra.mxu0 0.0
        %1339 = vmatprep.subr.mxu0 0.0
        %1340 = vmatpush1.msra.mxu0 0.0
        %1341 = vmatprep.subr.mxu0 0.0
        %1342 = vmatpush1.msra.mxu0 0.0
        %1343 = vmatprep.subr.mxu0 0.0
        %1344 = vmatpush1.msra.mxu0 0.0
        %1345 = vmatprep.subr.mxu0 0.0
        %1346 = vmatpush1.msra.mxu0 0.0
        %1347 = vmatprep.subr.mxu0 0.0
        %1348 = vmatpush1.msra.mxu0 0.0
        %1349 = vmatprep.subr.mxu0 0.0
        %1350 = vmatpush1.msra.mxu0 0.0
        %1351 = vmatprep.subr.mxu0 0.0
        %1352 = vmatpush1.msra.mxu0 0.0
        %1353 = vmatprep.subr.mxu0 0.0
        %1354 = vmatpush1.msra.mxu0 0.0
        %1355 = vmatprep.subr.mxu0 0.0
        %1356 = vmatpush1.msra.mxu0 0.0
        %1357 = vmatprep.subr.mxu0 0.0
        %1358 = vmatpush1.msra.mxu0 0.0
        %1359 = vmatprep.subr.mxu0 0.0
        %1360 = vmatpush1.msra.mxu0 0.0
        %1361 = vmatprep.subr.mxu0 0.0
        %1362 = vmatpush1.msra.mxu0 0.0
        %1363 = vmatprep.subr.mxu0 0.0
        %1364 = vmatpush1.msra.mxu0 0.0
        %1365 = vmatprep.subr.mxu0 0.0
        %1366 = vmatpush1.msra.mxu0 0.0
        %1367 = vmatprep.subr.mxu0 0.0
        %1368 = vmatpush1.msra.mxu0 0.0
        %1369 = vmatprep.subr.mxu0 0.0
        %1370 = vmatpush1.msra.mxu0 0.0
        %1371 = vmatprep.subr.mxu0 0.0
        %1372 = vmatpush1.msra.mxu0 0.0
        %1373 = vmatprep.subr.mxu0 0.0
        %1374 = vmatpush1.msra.mxu0 0.0
        %1375 = vmatprep.subr.mxu0 0.0
        %1376 = vmatpush1.msra.mxu0 0.0
        %1377 = vmatprep.subr.mxu0 0.0
        %1378 = vmatpush1.msra.mxu0 0.0
        %1379 = vmatprep.subr.mxu0 0.0
        %1380 = vmatpush1.msra.mxu0 0.0
        %1381 = vmatprep.subr.mxu0 0.0
        %1382 = vmatpush1.msra.mxu0 0.0
        %1383 = vmatprep.subr.mxu0 0.0
        %1384 = vmatpush1.msra.mxu0 0.0
        %1385 = vmatprep.subr.mxu0 0.0
        %1386 = vmatpush1.msra.mxu0 0.0
        %1387 = vmatprep.subr.mxu0 0.0
        %1388 = vmatpush1.msra.mxu0 0.0
        %1389 = vmatprep.subr.mxu0 0.0
        %1390 = vmatpush1.msra.mxu0 0.0
        %1391 = vmatprep.subr.mxu0 0.0
        %1392 = vmatpush1.msra.mxu0 0.0
        %1393 = vmatprep.subr.mxu0 0.0
        %1394 = vmatpush1.msra.mxu0 0.0
        %1395 = vmatprep.subr.mxu0 0.0
        %1396 = vmatpush1.msra.mxu0 0.0
        %1397 = vmatprep.subr.mxu0 0.0
        %1398 = vmatpush1.msra.mxu0 0.0
        %1399 = vmatprep.mubr.f32.mxu0 0.0
        %1400 = vmatmul.mubr.f32.gmra.mrb[0].mxu0 %v587
        %v1401 = vpop.f32.mrb[0].mxu0
        %v1402 = vadd.f32 0.0, %v1401
        %v1403 = vpop.f32.mrb[0].mxu0
        %v1404 = vadd.f32 0.0, %v1403
        %1405 = vmatprep.mubr.f32.mxu0 0.0
        %1406 = vmatmul.mubr.f32.gmra.mrb[0].mxu0 %v590
        %v1407 = vpop.f32.mrb[0].mxu0
        %v1408 = vadd.f32 0.0, %v1407
        %v1409 = vpop.f32.mrb[0].mxu0
        %v1410 = vadd.f32 0.0, %v1409
        %1411 = vmatprep.mubr.f32.mxu0 0.0
        %1412 = vmatmul.mubr.f32.gmra.mrb[0].mxu0 %v593
        %v1413 = vpop.f32.mrb[0].mxu0
        %v1414 = vadd.f32 0.0, %v1413
        %v1415 = vpop.f32.mrb[0].mxu0
        %v1416 = vadd.f32 0.0, %v1415
        %1417 = vmatprep.mubr.f32.mxu0 0.0
        %1418 = vmatmul.mubr.f32.gmra.mrb[0].mxu0 %v596
        %v1419 = vpop.f32.mrb[0].mxu0
        %v1420 = vadd.f32 0.0, %v1419
        %v1421 = vpop.f32.mrb[0].mxu0
        %v1422 = vadd.f32 0.0, %v1421
        %1423 = vmatprep.mubr.f32.mxu0 0.0
        %1424 = vmatmul.mubr.f32.gmra.mrb[0].mxu0 %v599
        %v1425 = vpop.f32.mrb[0].mxu0
        %v1426 = vadd.f32 0.0, %v1425
        %v1427 = vpop.f32.mrb[0].mxu0
        %v1428 = vadd.f32 0.0, %v1427
        %1429 = vmatprep.mubr.f32.mxu0 0.0
        %1430 = vmatmul.mubr.f32.gmra.mrb[0].mxu0 %v602
        %v1431 = vpop.f32.mrb[0].mxu0
        %v1432 = vadd.f32 0.0, %v1431
        %v1433 = vpop.f32.mrb[0].mxu0
        %v1434 = vadd.f32 0.0, %v1433
        %1435 = vmatprep.mubr.f32.mxu0 0.0
        %1436 = vmatmul.mubr.f32.gmra.mrb[0].mxu0 %v605
        %v1437 = vpop.f32.mrb[0].mxu0
        %v1438 = vadd.f32 0.0, %v1437
        %v1439 = vpop.f32.mrb[0].mxu0
        %v1440 = vadd.f32 0.0, %v1439
        %1441 = vmatprep.mubr.f32.mxu0 0.0
        %1442 = vmatmul.mubr.f32.gmra.mrb[0].mxu0 %v608
        %v1443 = vpop.f32.mrb[0].mxu0
        %v1444 = vadd.f32 0.0, %v1443
        %v1445 = vpop.f32.mrb[0].mxu0
        %v1446 = vadd.f32 0.0, %v1445
        %1447 = vmatprep.mubr.f32.mxu0 0.0
        %1448 = vmatmul.mubr.f32.gmra.mrb[0].mxu0 %v611
        %v1449 = vpop.f32.mrb[0].mxu0
        %v1450 = vadd.f32 0.0, %v1449
        %v1451 = vpop.f32.mrb[0].mxu0
        %v1452 = vadd.f32 0.0, %v1451
        %1453 = vmatprep.mubr.f32.mxu0 0.0
        %1454 = vmatmul.mubr.f32.gmra.mrb[0].mxu0 %v614
        %v1455 = vpop.f32.mrb[0].mxu0
        %v1456 = vadd.f32 0.0, %v1455
        %v1457 = vpop.f32.mrb[0].mxu0
        %v1458 = vadd.f32 0.0, %v1457
        %1459 = vmatprep.mubr.f32.mxu0 0.0
        %1460 = vmatmul.mubr.f32.gmra.mrb[0].mxu0 %v617
        %v1461 = vpop.f32.mrb[0].mxu0
        %v1462 = vadd.f32 0.0, %v1461
        %v1463 = vpop.f32.mrb[0].mxu0
        %v1464 = vadd.f32 0.0, %v1463
        %1465 = vmatprep.mubr.f32.mxu0 0.0
        %1466 = vmatmul.mubr.f32.gmra.mrb[0].mxu0 %v620
        %v1467 = vpop.f32.mrb[0].mxu0
        %v1468 = vadd.f32 0.0, %v1467
        %v1469 = vpop.f32.mrb[0].mxu0
        %v1470 = vadd.f32 0.0, %v1469
        %1471 = vdwg.mxu0
        %1472 = vmatprep.subr.mxu0 %v648
        %1473 = vmatpush1.msra.mxu0 %v646
        %1474 = vmatprep.subr.mxu0 0.0
        %1475 = vmatpush1.msra.mxu0 0.0
        %1476 = vmatprep.subr.mxu0 0.0
        %1477 = vmatpush1.msra.mxu0 0.0
        %1478 = vmatprep.subr.mxu0 0.0
        %1479 = vmatpush1.msra.mxu0 0.0
        %1480 = vmatprep.subr.mxu0 0.0
        %1481 = vmatpush1.msra.mxu0 0.0
        %1482 = vmatprep.subr.mxu0 0.0
        %1483 = vmatpush1.msra.mxu0 0.0
        %1484 = vmatprep.subr.mxu0 0.0
        %1485 = vmatpush1.msra.mxu0 0.0
        %1486 = vmatprep.subr.mxu0 0.0
        %1487 = vmatpush1.msra.mxu0 0.0
        %1488 = vmatprep.subr.mxu0 0.0
        %1489 = vmatpush1.msra.mxu0 0.0
        %1490 = vmatprep.subr.mxu0 0.0
        %1491 = vmatpush1.msra.mxu0 0.0
        %1492 = vmatprep.subr.mxu0 0.0
        %1493 = vmatpush1.msra.mxu0 0.0
        %1494 = vmatprep.subr.mxu0 0.0
        %1495 = vmatpush1.msra.mxu0 0.0
        %1496 = vmatprep.subr.mxu0 0.0
        %1497 = vmatpush1.msra.mxu0 0.0
        %1498 = vmatprep.subr.mxu0 0.0
        %1499 = vmatpush1.msra.mxu0 0.0
        %1500 = vmatprep.subr.mxu0 0.0
        %1501 = vmatpush1.msra.mxu0 0.0
        %1502 = vmatprep.subr.mxu0 0.0
        %1503 = vmatpush1.msra.mxu0 0.0
        %1504 = vmatprep.subr.mxu0 0.0
        %1505 = vmatpush1.msra.mxu0 0.0
        %1506 = vmatprep.subr.mxu0 0.0
        %1507 = vmatpush1.msra.mxu0 0.0
        %1508 = vmatprep.subr.mxu0 0.0
        %1509 = vmatpush1.msra.mxu0 0.0
        %1510 = vmatprep.subr.mxu0 0.0
        %1511 = vmatpush1.msra.mxu0 0.0
        %1512 = vmatprep.subr.mxu0 0.0
        %1513 = vmatpush1.msra.mxu0 0.0
        %1514 = vmatprep.subr.mxu0 0.0
        %1515 = vmatpush1.msra.mxu0 0.0
        %1516 = vmatprep.subr.mxu0 0.0
        %1517 = vmatpush1.msra.mxu0 0.0
        %1518 = vmatprep.subr.mxu0 0.0
        %1519 = vmatpush1.msra.mxu0 0.0
        %1520 = vmatprep.subr.mxu0 0.0
        %1521 = vmatpush1.msra.mxu0 0.0
        %1522 = vmatprep.subr.mxu0 0.0
        %1523 = vmatpush1.msra.mxu0 0.0
        %1524 = vmatprep.subr.mxu0 0.0
        %1525 = vmatpush1.msra.mxu0 0.0
        %1526 = vmatprep.subr.mxu0 0.0
        %1527 = vmatpush1.msra.mxu0 0.0
        %1528 = vmatprep.subr.mxu0 0.0
        %1529 = vmatpush1.msra.mxu0 0.0
        %1530 = vmatprep.subr.mxu0 0.0
        %1531 = vmatpush1.msra.mxu0 0.0
        %1532 = vmatprep.subr.mxu0 0.0
        %1533 = vmatpush1.msra.mxu0 0.0
        %1534 = vmatprep.subr.mxu0 0.0
        %1535 = vmatpush1.msra.mxu0 0.0
        %1536 = vmatprep.mubr.f32.mxu0 0.0
        %1537 = vmatmul.mubr.f32.gmra.mrb[0].mxu0 %v587
        %v1538 = vpop.f32.mrb[0].mxu0
        %v1539 = vadd.f32 0.0, %v1538
        %v1540 = vpop.f32.mrb[0].mxu0
        %v1541 = vadd.f32 0.0, %v1540
        %1542 = vmatprep.mubr.f32.mxu0 0.0
        %1543 = vmatmul.mubr.f32.gmra.mrb[0].mxu0 %v590
        %v1544 = vpop.f32.mrb[0].mxu0
        %v1545 = vadd.f32 0.0, %v1544
        %v1546 = vpop.f32.mrb[0].mxu0
        %v1547 = vadd.f32 0.0, %v1546
        %1548 = vmatprep.mubr.f32.mxu0 0.0
        %1549 = vmatmul.mubr.f32.gmra.mrb[0].mxu0 %v593
        %v1550 = vpop.f32.mrb[0].mxu0
        %v1551 = vadd.f32 0.0, %v1550
        %v1552 = vpop.f32.mrb[0].mxu0
        %v1553 = vadd.f32 0.0, %v1552
        %1554 = vmatprep.mubr.f32.mxu0 0.0
        %1555 = vmatmul.mubr.f32.gmra.mrb[0].mxu0 %v596
        %v1556 = vpop.f32.mrb[0].mxu0
        %v1557 = vadd.f32 0.0, %v1556
        %v1558 = vpop.f32.mrb[0].mxu0
        %v1559 = vadd.f32 0.0, %v1558
        %1560 = vmatprep.mubr.f32.mxu0 0.0
        %1561 = vmatmul.mubr.f32.gmra.mrb[0].mxu0 %v599
        %v1562 = vpop.f32.mrb[0].mxu0
        %v1563 = vadd.f32 0.0, %v1562
        %v1564 = vpop.f32.mrb[0].mxu0
        %v1565 = vadd.f32 0.0, %v1564
        %1566 = vmatprep.mubr.f32.mxu0 0.0
        %1567 = vmatmul.mubr.f32.gmra.mrb[0].mxu0 %v602
        %v1568 = vpop.f32.mrb[0].mxu0
        %v1569 = vadd.f32 0.0, %v1568
        %v1570 = vpop.f32.mrb[0].mxu0
        %v1571 = vadd.f32 0.0, %v1570
        %1572 = vmatprep.mubr.f32.mxu0 0.0
        %1573 = vmatmul.mubr.f32.gmra.mrb[0].mxu0 %v605
        %v1574 = vpop.f32.mrb[0].mxu0
        %v1575 = vadd.f32 0.0, %v1574
        %v1576 = vpop.f32.mrb[0].mxu0
        %v1577 = vadd.f32 0.0, %v1576
        %1578 = vmatprep.mubr.f32.mxu0 0.0
        %1579 = vmatmul.mubr.f32.gmra.mrb[0].mxu0 %v608
        %v1580 = vpop.f32.mrb[0].mxu0
        %v1581 = vadd.f32 0.0, %v1580
        %v1582 = vpop.f32.mrb[0].mxu0
        %v1583 = vadd.f32 0.0, %v1582
        %1584 = vmatprep.mubr.f32.mxu0 0.0
        %1585 = vmatmul.mubr.f32.gmra.mrb[0].mxu0 %v611
        %v1586 = vpop.f32.mrb[0].mxu0
        %v1587 = vadd.f32 0.0, %v1586
        %v1588 = vpop.f32.mrb[0].mxu0
        %v1589 = vadd.f32 0.0, %v1588
        %1590 = vmatprep.mubr.f32.mxu0 0.0
        %1591 = vmatmul.mubr.f32.gmra.mrb[0].mxu0 %v614
        %v1592 = vpop.f32.mrb[0].mxu0
        %v1593 = vadd.f32 0.0, %v1592
        %v1594 = vpop.f32.mrb[0].mxu0
        %v1595 = vadd.f32 0.0, %v1594
        %1596 = vmatprep.mubr.f32.mxu0 0.0
        %1597 = vmatmul.mubr.f32.gmra.mrb[0].mxu0 %v617
        %v1598 = vpop.f32.mrb[0].mxu0
        %v1599 = vadd.f32 0.0, %v1598
        %v1600 = vpop.f32.mrb[0].mxu0
        %v1601 = vadd.f32 0.0, %v1600
        %1602 = vmatprep.mubr.f32.mxu0 0.0
        %1603 = vmatmul.mubr.f32.gmra.mrb[0].mxu0 %v620
        %v1604 = vpop.f32.mrb[0].mxu0
        %v1605 = vadd.f32 0.0, %v1604
        %v1606 = vpop.f32.mrb[0].mxu0
        %v1607 = vadd.f32 0.0, %v1606
        %1608 = vdwg.mxu0
        %1609 = vmatprep.subr.mxu0 %v652
        %1610 = vmatpush1.msra.mxu0 %v650
        %1611 = vmatprep.subr.mxu0 0.0
        %1612 = vmatpush1.msra.mxu0 0.0
        %1613 = vmatprep.subr.mxu0 0.0
        %1614 = vmatpush1.msra.mxu0 0.0
        %1615 = vmatprep.subr.mxu0 0.0
        %1616 = vmatpush1.msra.mxu0 0.0
        %1617 = vmatprep.subr.mxu0 0.0
        %1618 = vmatpush1.msra.mxu0 0.0
        %1619 = vmatprep.subr.mxu0 0.0
        %1620 = vmatpush1.msra.mxu0 0.0
        %1621 = vmatprep.subr.mxu0 0.0
        %1622 = vmatpush1.msra.mxu0 0.0
        %1623 = vmatprep.subr.mxu0 0.0
        %1624 = vmatpush1.msra.mxu0 0.0
        %1625 = vmatprep.subr.mxu0 0.0
        %1626 = vmatpush1.msra.mxu0 0.0
        %1627 = vmatprep.subr.mxu0 0.0
        %1628 = vmatpush1.msra.mxu0 0.0
        %1629 = vmatprep.subr.mxu0 0.0
        %1630 = vmatpush1.msra.mxu0 0.0
        %1631 = vmatprep.subr.mxu0 0.0
        %1632 = vmatpush1.msra.mxu0 0.0
        %1633 = vmatprep.subr.mxu0 0.0
        %1634 = vmatpush1.msra.mxu0 0.0
        %1635 = vmatprep.subr.mxu0 0.0
        %1636 = vmatpush1.msra.mxu0 0.0
        %1637 = vmatprep.subr.mxu0 0.0
        %1638 = vmatpush1.msra.mxu0 0.0
        %1639 = vmatprep.subr.mxu0 0.0
        %1640 = vmatpush1.msra.mxu0 0.0
        %1641 = vmatprep.subr.mxu0 0.0
        %1642 = vmatpush1.msra.mxu0 0.0
        %1643 = vmatprep.subr.mxu0 0.0
        %1644 = vmatpush1.msra.mxu0 0.0
        %1645 = vmatprep.subr.mxu0 0.0
        %1646 = vmatpush1.msra.mxu0 0.0
        %1647 = vmatprep.subr.mxu0 0.0
        %1648 = vmatpush1.msra.mxu0 0.0
        %1649 = vmatprep.subr.mxu0 0.0
        %1650 = vmatpush1.msra.mxu0 0.0
        %1651 = vmatprep.subr.mxu0 0.0
        %1652 = vmatpush1.msra.mxu0 0.0
        %1653 = vmatprep.subr.mxu0 0.0
        %1654 = vmatpush1.msra.mxu0 0.0
        %1655 = vmatprep.subr.mxu0 0.0
        %1656 = vmatpush1.msra.mxu0 0.0
        %1657 = vmatprep.subr.mxu0 0.0
        %1658 = vmatpush1.msra.mxu0 0.0
        %1659 = vmatprep.subr.mxu0 0.0
        %1660 = vmatpush1.msra.mxu0 0.0
        %1661 = vmatprep.subr.mxu0 0.0
        %1662 = vmatpush1.msra.mxu0 0.0
        %1663 = vmatprep.subr.mxu0 0.0
        %1664 = vmatpush1.msra.mxu0 0.0
        %1665 = vmatprep.subr.mxu0 0.0
        %1666 = vmatpush1.msra.mxu0 0.0
        %1667 = vmatprep.subr.mxu0 0.0
        %1668 = vmatpush1.msra.mxu0 0.0
        %1669 = vmatprep.subr.mxu0 0.0
        %1670 = vmatpush1.msra.mxu0 0.0
        %1671 = vmatprep.subr.mxu0 0.0
        %1672 = vmatpush1.msra.mxu0 0.0
        %1673 = vmatprep.mubr.f32.mxu0 0.0
        %1674 = vmatmul.mubr.f32.gmra.mrb[0].mxu0 %v587
        %v1675 = vpop.f32.mrb[0].mxu0
        %v1676 = vadd.f32 0.0, %v1675
        %v1677 = vpop.f32.mrb[0].mxu0
        %1678 = vmatprep.mubr.f32.mxu0 0.0
        %1679 = vmatmul.mubr.f32.gmra.mrb[0].mxu0 %v590
        %v1680 = vpop.f32.mrb[0].mxu0
        %v1681 = vadd.f32 0.0, %v1680
        %v1682 = vpop.f32.mrb[0].mxu0
        %1683 = vmatprep.mubr.f32.mxu0 0.0
        %1684 = vmatmul.mubr.f32.gmra.mrb[0].mxu0 %v593
        %v1685 = vpop.f32.mrb[0].mxu0
        %v1686 = vadd.f32 0.0, %v1685
        %v1687 = vpop.f32.mrb[0].mxu0
        %1688 = vmatprep.mubr.f32.mxu0 0.0
        %1689 = vmatmul.mubr.f32.gmra.mrb[0].mxu0 %v596
        %v1690 = vpop.f32.mrb[0].mxu0
        %v1691 = vadd.f32 0.0, %v1690
        %v1692 = vpop.f32.mrb[0].mxu0
        %1693 = vmatprep.mubr.f32.mxu0 0.0
        %1694 = vmatmul.mubr.f32.gmra.mrb[0].mxu0 %v599
        %v1695 = vpop.f32.mrb[0].mxu0
        %v1696 = vadd.f32 0.0, %v1695
        %v1697 = vpop.f32.mrb[0].mxu0
        %v1698 = vadd.f32 0.0, %v1697
        %1699 = vmatprep.mubr.f32.mxu0 0.0
        %1700 = vmatmul.mubr.f32.gmra.mrb[0].mxu0 %v602
        %v1701 = vpop.f32.mrb[0].mxu0
        %v1702 = vadd.f32 0.0, %v1701
        %v1703 = vpop.f32.mrb[0].mxu0
        %v1704 = vadd.f32 0.0, %v1703
        %1705 = vmatprep.mubr.f32.mxu0 0.0
        %1706 = vmatmul.mubr.f32.gmra.mrb[0].mxu0 %v605
        %v1707 = vpop.f32.mrb[0].mxu0
        %v1708 = vadd.f32 0.0, %v1707
        %v1709 = vpop.f32.mrb[0].mxu0
        %v1710 = vadd.f32 0.0, %v1709
        %1711 = vmatprep.mubr.f32.mxu0 0.0
        %1712 = vmatmul.mubr.f32.gmra.mrb[0].mxu0 %v608
        %v1713 = vpop.f32.mrb[0].mxu0
        %v1714 = vadd.f32 0.0, %v1713
        %v1715 = vpop.f32.mrb[0].mxu0
        %v1716 = vadd.f32 0.0, %v1715
        %1717 = vmatprep.mubr.f32.mxu0 0.0
        %1718 = vmatmul.mubr.f32.gmra.mrb[0].mxu0 %v611
        %v1719 = vpop.f32.mrb[0].mxu0
        %v1720 = vadd.f32 0.0, %v1719
        %v1721 = vpop.f32.mrb[0].mxu0
        %v1722 = vadd.f32 0.0, %v1721
        %1723 = vmatprep.mubr.f32.mxu0 0.0
        %1724 = vmatmul.mubr.f32.gmra.mrb[0].mxu0 %v614
        %v1725 = vpop.f32.mrb[0].mxu0
        %v1726 = vadd.f32 0.0, %v1725
        %v1727 = vpop.f32.mrb[0].mxu0
        %v1728 = vadd.f32 0.0, %v1727
        %1729 = vmatprep.mubr.f32.mxu0 0.0
        %1730 = vmatmul.mubr.f32.gmra.mrb[0].mxu0 %v617
        %v1731 = vpop.f32.mrb[0].mxu0
        %v1732 = vadd.f32 0.0, %v1731
        %v1733 = vpop.f32.mrb[0].mxu0
        %v1734 = vadd.f32 0.0, %v1733
        %1735 = vmatprep.mubr.f32.mxu0 0.0
        %1736 = vmatmul.mubr.f32.gmra.mrb[0].mxu0 %v620
        %v1737 = vpop.f32.mrb[0].mxu0
        %v1738 = vadd.f32 0.0, %v1737
        %v1739 = vpop.f32.mrb[0].mxu0
        %v1740 = vadd.f32 0.0, %v1739
        %1741 = vdwg.mxu0
        %v1742 = vadd.f32 %v745, 0.0
        %v1743 = vadd.f32 %v721, %v747
        %v1744 = vadd.f32 %v723, %v878
        %v1745 = vadd.f32 %v854, %v880
        %v1746 = vadd.f32 %v856, %v1015
        %v1747 = vadd.f32 %v991, %v1017
        %v1748 = vadd.f32 %v993, %v1152
        %v1749 = vadd.f32 %v1128, %v1154
        %v1750 = vadd.f32 %v1130, %v1289
        %v1751 = vadd.f32 %v1265, %v1291
        %v1752 = vadd.f32 %v1267, %v1426
        %v1753 = vadd.f32 %v1402, %v1428
        %v1754 = vadd.f32 %v1404, %v1563
        %v1755 = vadd.f32 %v1539, %v1565
        %v1756 = vadd.f32 %v1541, %v1696
        %v1757 = vadd.f32 %v1676, %v1698
        %v1758 = vadd.f32 %v751, 0.0
        %v1759 = vadd.f32 %v727, %v753
        %v1760 = vadd.f32 %v729, %v884
        %v1761 = vadd.f32 %v860, %v886
        %v1762 = vadd.f32 %v862, %v1021
        %v1763 = vadd.f32 %v997, %v1023
        %v1764 = vadd.f32 %v999, %v1158
        %v1765 = vadd.f32 %v1134, %v1160
        %v1766 = vadd.f32 %v1136, %v1295
        %v1767 = vadd.f32 %v1271, %v1297
        %v1768 = vadd.f32 %v1273, %v1432
        %v1769 = vadd.f32 %v1408, %v1434
        %v1770 = vadd.f32 %v1410, %v1569
        %v1771 = vadd.f32 %v1545, %v1571
        %v1772 = vadd.f32 %v1547, %v1702
        %v1773 = vadd.f32 %v1681, %v1704
        %v1774 = vadd.f32 %v757, 0.0
        %v1775 = vadd.f32 %v733, %v759
        %v1776 = vadd.f32 %v735, %v890
        %v1777 = vadd.f32 %v866, %v892
        %v1778 = vadd.f32 %v868, %v1027
        %v1779 = vadd.f32 %v1003, %v1029
        %v1780 = vadd.f32 %v1005, %v1164
        %v1781 = vadd.f32 %v1140, %v1166
        %v1782 = vadd.f32 %v1142, %v1301
        %v1783 = vadd.f32 %v1277, %v1303
        %v1784 = vadd.f32 %v1279, %v1438
        %v1785 = vadd.f32 %v1414, %v1440
        %v1786 = vadd.f32 %v1416, %v1575
        %v1787 = vadd.f32 %v1551, %v1577
        %v1788 = vadd.f32 %v1553, %v1708
        %v1789 = vadd.f32 %v1686, %v1710
        %v1790 = vadd.f32 %v763, 0.0
        %v1791 = vadd.f32 %v739, %v765
        %v1792 = vadd.f32 %v741, %v896
        %v1793 = vadd.f32 %v872, %v898
        %v1794 = vadd.f32 %v874, %v1033
        %v1795 = vadd.f32 %v1009, %v1035
        %v1796 = vadd.f32 %v1011, %v1170
        %v1797 = vadd.f32 %v1146, %v1172
        %v1798 = vadd.f32 %v1148, %v1307
        %v1799 = vadd.f32 %v1283, %v1309
        %v1800 = vadd.f32 %v1285, %v1444
        %v1801 = vadd.f32 %v1420, %v1446
        %v1802 = vadd.f32 %v1422, %v1581
        %v1803 = vadd.f32 %v1557, %v1583
        %v1804 = vadd.f32 %v1559, %v1714
        %v1805 = vadd.f32 %v1691, %v1716
        %v1806 = vadd.f32 %v1742, %v770
        %v1807 = vadd.f32 %v1743, %v902
        %v1808 = vadd.f32 %v1744, %v904
        %v1809 = vadd.f32 %v1745, %v1039
        %v1810 = vadd.f32 %v1746, %v1041
        %v1811 = vadd.f32 %v1747, %v1176
        %v1812 = vadd.f32 %v1748, %v1178
        %v1813 = vadd.f32 %v1749, %v1313
        %v1814 = vadd.f32 %v1750, %v1315
        %v1815 = vadd.f32 %v1751, %v1450
        %v1816 = vadd.f32 %v1752, %v1452
        %v1817 = vadd.f32 %v1753, %v1587
        %v1818 = vadd.f32 %v1754, %v1589
        %v1819 = vadd.f32 %v1755, %v1720
        %v1820 = vadd.f32 %v1756, %v1722
        %v1821 = vadd.f32 %v1757, 0.0
        %v1822 = vadd.f32 %v1758, %v775
        %v1823 = vadd.f32 %v1759, %v908
        %v1824 = vadd.f32 %v1760, %v910
        %v1825 = vadd.f32 %v1761, %v1045
        %v1826 = vadd.f32 %v1762, %v1047
        %v1827 = vadd.f32 %v1763, %v1182
        %v1828 = vadd.f32 %v1764, %v1184
        %v1829 = vadd.f32 %v1765, %v1319
        %v1830 = vadd.f32 %v1766, %v1321
        %v1831 = vadd.f32 %v1767, %v1456
        %v1832 = vadd.f32 %v1768, %v1458
        %v1833 = vadd.f32 %v1769, %v1593
        %v1834 = vadd.f32 %v1770, %v1595
        %v1835 = vadd.f32 %v1771, %v1726
        %v1836 = vadd.f32 %v1772, %v1728
        %v1837 = vadd.f32 %v1773, 0.0
        %v1838 = vadd.f32 %v1774, %v780
        %v1839 = vadd.f32 %v1775, %v914
        %v1840 = vadd.f32 %v1776, %v916
        %v1841 = vadd.f32 %v1777, %v1051
        %v1842 = vadd.f32 %v1778, %v1053
        %v1843 = vadd.f32 %v1779, %v1188
        %v1844 = vadd.f32 %v1780, %v1190
        %v1845 = vadd.f32 %v1781, %v1325
        %v1846 = vadd.f32 %v1782, %v1327
        %v1847 = vadd.f32 %v1783, %v1462
        %v1848 = vadd.f32 %v1784, %v1464
        %v1849 = vadd.f32 %v1785, %v1599
        %v1850 = vadd.f32 %v1786, %v1601
        %v1851 = vadd.f32 %v1787, %v1732
        %v1852 = vadd.f32 %v1788, %v1734
        %v1853 = vadd.f32 %v1789, 0.0
        %v1854 = vadd.f32 %v1790, %v785
        %v1855 = vadd.f32 %v1791, %v920
        %v1856 = vadd.f32 %v1792, %v922
        %v1857 = vadd.f32 %v1793, %v1057
        %v1858 = vadd.f32 %v1794, %v1059
        %v1859 = vadd.f32 %v1795, %v1194
        %v1860 = vadd.f32 %v1796, %v1196
        %v1861 = vadd.f32 %v1797, %v1331
        %v1862 = vadd.f32 %v1798, %v1333
        %v1863 = vadd.f32 %v1799, %v1468
        %v1864 = vadd.f32 %v1800, %v1470
        %v1865 = vadd.f32 %v1801, %v1605
        %v1866 = vadd.f32 %v1802, %v1607
        %v1867 = vadd.f32 %v1803, %v1738
        %v1868 = vadd.f32 %v1804, %v1740
        %v1869 = vadd.f32 %v1805, 0.0
        %v1870 = vld [vmem:[%s7] sm:$0xff]
        %v1871 = vld [vmem:[%s7 + $0x8] sm:$0xff]
        %v1872 = vld [vmem:[%s7 + $0x10] sm:$0xff]
        %v1873 = vld [vmem:[%s7 + $0x18] sm:$0xff]
        %1875 = vset.pattern.permute.xlu0 0
        %1876 = vperm.xlu0 %1875, %v1870
        %v1877 = vpop.permute.xlu0 %1876
        %1880 = vset.pattern.permute.xlu0 0
        %1881 = vperm.xlu0 %1880, %v1871
        %v1882 = vpop.permute.xlu0 %1881
        %1885 = vset.pattern.permute.xlu0 0
        %1886 = vperm.xlu0 %1885, %v1872
        %v1887 = vpop.permute.xlu0 %1886
        %1890 = vset.pattern.permute.xlu0 0
        %1891 = vperm.xlu0 %1890, %v1873
        %v1892 = vpop.permute.xlu0 %1891
        %v1894 = vadd.f32 %v1806, %v1877
        %v1895 = vadd.f32 %v1807, %v1877
        %v1896 = vadd.f32 %v1808, %v1877
        %v1897 = vadd.f32 %v1809, %v1877
        %v1898 = vadd.f32 %v1810, %v1877
        %v1899 = vadd.f32 %v1811, %v1877
        %v1900 = vadd.f32 %v1812, %v1877
        %v1901 = vadd.f32 %v1813, %v1877
        %v1902 = vadd.f32 %v1814, %v1877
        %v1903 = vadd.f32 %v1815, %v1877
        %v1904 = vadd.f32 %v1816, %v1877
        %v1905 = vadd.f32 %v1817, %v1877
        %v1906 = vadd.f32 %v1818, %v1877
        %v1907 = vadd.f32 %v1819, %v1877
        %v1908 = vadd.f32 %v1820, %v1877
        %v1909 = vadd.f32 %v1821, %v1877
        %v1910 = vadd.f32 %v1822, %v1882
        %v1911 = vadd.f32 %v1823, %v1882
        %v1912 = vadd.f32 %v1824, %v1882
        %v1913 = vadd.f32 %v1825, %v1882
        %v1914 = vadd.f32 %v1826, %v1882
        %v1915 = vadd.f32 %v1827, %v1882
        %v1916 = vadd.f32 %v1828, %v1882
        %v1917 = vadd.f32 %v1829, %v1882
        %v1918 = vadd.f32 %v1830, %v1882
        %v1919 = vadd.f32 %v1831, %v1882
        %v1920 = vadd.f32 %v1832, %v1882
        %v1921 = vadd.f32 %v1833, %v1882
        %v1922 = vadd.f32 %v1834, %v1882
        %v1923 = vadd.f32 %v1835, %v1882
        %v1924 = vadd.f32 %v1836, %v1882
        %v1925 = vadd.f32 %v1837, %v1882
        %v1926 = vadd.f32 %v1838, %v1887
        %v1927 = vadd.f32 %v1839, %v1887
        %v1928 = vadd.f32 %v1840, %v1887
        %v1929 = vadd.f32 %v1841, %v1887
        %v1930 = vadd.f32 %v1842, %v1887
        %v1931 = vadd.f32 %v1843, %v1887
        %v1932 = vadd.f32 %v1844, %v1887
        %v1933 = vadd.f32 %v1845, %v1887
        %v1934 = vadd.f32 %v1846, %v1887
        %v1935 = vadd.f32 %v1847, %v1887
        %v1936 = vadd.f32 %v1848, %v1887
        %v1937 = vadd.f32 %v1849, %v1887
        %v1938 = vadd.f32 %v1850, %v1887
        %v1939 = vadd.f32 %v1851, %v1887
        %v1940 = vadd.f32 %v1852, %v1887
        %v1941 = vadd.f32 %v1853, %v1887
        %v1942 = vadd.f32 %v1854, %v1892
        %v1943 = vadd.f32 %v1855, %v1892
        %v1944 = vadd.f32 %v1856, %v1892
        %v1945 = vadd.f32 %v1857, %v1892
        %v1946 = vadd.f32 %v1858, %v1892
        %v1947 = vadd.f32 %v1859, %v1892
        %v1948 = vadd.f32 %v1860, %v1892
        %v1949 = vadd.f32 %v1861, %v1892
        %v1950 = vadd.f32 %v1862, %v1892
        %v1951 = vadd.f32 %v1863, %v1892
        %v1952 = vadd.f32 %v1864, %v1892
        %v1953 = vadd.f32 %v1865, %v1892
        %v1954 = vadd.f32 %v1866, %v1892
        %v1955 = vadd.f32 %v1867, %v1892
        %v1956 = vadd.f32 %v1868, %v1892
        %v1957 = vadd.f32 %v1869, %v1892
        %v1958 = vmax.f32 %v1894, 0.0
        %v1959 = vmax.f32 %v1895, 0.0
        %v1960 = vmax.f32 %v1896, 0.0
        %v1961 = vmax.f32 %v1897, 0.0
        %v1962 = vmax.f32 %v1898, 0.0
        %v1963 = vmax.f32 %v1899, 0.0
        %v1964 = vmax.f32 %v1900, 0.0
        %v1965 = vmax.f32 %v1901, 0.0
        %v1966 = vmax.f32 %v1902, 0.0
        %v1967 = vmax.f32 %v1903, 0.0
        %v1968 = vmax.f32 %v1904, 0.0
        %v1969 = vmax.f32 %v1905, 0.0
        %v1970 = vmax.f32 %v1906, 0.0
        %v1971 = vmax.f32 %v1907, 0.0
        %v1972 = vmax.f32 %v1908, 0.0
        %v1973 = vmax.f32 %v1909, 0.0
        %v1974 = vmax.f32 %v1910, 0.0
        %v1975 = vmax.f32 %v1911, 0.0
        %v1976 = vmax.f32 %v1912, 0.0
        %v1977 = vmax.f32 %v1913, 0.0
        %v1978 = vmax.f32 %v1914, 0.0
        %v1979 = vmax.f32 %v1915, 0.0
        %v1980 = vmax.f32 %v1916, 0.0
        %v1981 = vmax.f32 %v1917, 0.0
        %v1982 = vmax.f32 %v1918, 0.0
        %v1983 = vmax.f32 %v1919, 0.0
        %v1984 = vmax.f32 %v1920, 0.0
        %v1985 = vmax.f32 %v1921, 0.0
        %v1986 = vmax.f32 %v1922, 0.0
        %v1987 = vmax.f32 %v1923, 0.0
        %v1988 = vmax.f32 %v1924, 0.0
        %v1989 = vmax.f32 %v1925, 0.0
        %v1990 = vmax.f32 %v1926, 0.0
        %v1991 = vmax.f32 %v1927, 0.0
        %v1992 = vmax.f32 %v1928, 0.0
        %v1993 = vmax.f32 %v1929, 0.0
        %v1994 = vmax.f32 %v1930, 0.0
        %v1995 = vmax.f32 %v1931, 0.0
        %v1996 = vmax.f32 %v1932, 0.0
        %v1997 = vmax.f32 %v1933, 0.0
        %v1998 = vmax.f32 %v1934, 0.0
        %v1999 = vmax.f32 %v1935, 0.0
        %v2000 = vmax.f32 %v1936, 0.0
        %v2001 = vmax.f32 %v1937, 0.0
        %v2002 = vmax.f32 %v1938, 0.0
        %v2003 = vmax.f32 %v1939, 0.0
        %v2004 = vmax.f32 %v1940, 0.0
        %v2005 = vmax.f32 %v1941, 0.0
        %v2006 = vmax.f32 %v1942, 0.0
        %v2007 = vmax.f32 %v1943, 0.0
        %v2008 = vmax.f32 %v1944, 0.0
        %v2009 = vmax.f32 %v1945, 0.0
        %v2010 = vmax.f32 %v1946, 0.0
        %v2011 = vmax.f32 %v1947, 0.0
        %v2012 = vmax.f32 %v1948, 0.0
        %v2013 = vmax.f32 %v1949, 0.0
        %v2014 = vmax.f32 %v1950, 0.0
        %v2015 = vmax.f32 %v1951, 0.0
        %v2016 = vmax.f32 %v1952, 0.0
        %v2017 = vmax.f32 %v1953, 0.0
        %v2018 = vmax.f32 %v1954, 0.0
        %v2019 = vmax.f32 %v1955, 0.0
        %v2020 = vmax.f32 %v1956, 0.0
        %v2021 = vmax.f32 %v1957, 0.0
        %v2022 = vadd.f32 %v1958, %v1959
        %v2023 = vadd.f32 %v1974, %v1975
        %v2024 = vadd.f32 %v1990, %v1991
        %v2025 = vadd.f32 %v2006, %v2007
        %v2026 = vadd.f32 %v2022, %v1960
        %v2027 = vadd.f32 %v2023, %v1976
        %v2028 = vadd.f32 %v2024, %v1992
        %v2029 = vadd.f32 %v2025, %v2008
        %v2030 = vadd.f32 %v2026, %v1961
        %v2031 = vadd.f32 %v2027, %v1977
        %v2032 = vadd.f32 %v2028, %v1993
        %v2033 = vadd.f32 %v2029, %v2009
        %v2034 = vadd.f32 %v2030, %v1962
        %v2035 = vadd.f32 %v2031, %v1978
        %v2036 = vadd.f32 %v2032, %v1994
        %v2037 = vadd.f32 %v2033, %v2010
        %v2038 = vadd.f32 %v2034, %v1963
        %v2039 = vadd.f32 %v2035, %v1979
        %v2040 = vadd.f32 %v2036, %v1995
        %v2041 = vadd.f32 %v2037, %v2011
        %v2042 = vadd.f32 %v2038, %v1964
        %v2043 = vadd.f32 %v2039, %v1980
        %v2044 = vadd.f32 %v2040, %v1996
        %v2045 = vadd.f32 %v2041, %v2012
        %v2046 = vadd.f32 %v2042, %v1965
        %v2047 = vadd.f32 %v2043, %v1981
        %v2048 = vadd.f32 %v2044, %v1997
        %v2049 = vadd.f32 %v2045, %v2013
        %v2050 = vadd.f32 %v2046, %v1966
        %v2051 = vadd.f32 %v2047, %v1982
        %v2052 = vadd.f32 %v2048, %v1998
        %v2053 = vadd.f32 %v2049, %v2014
        %v2054 = vadd.f32 %v2050, %v1967
        %v2055 = vadd.f32 %v2051, %v1983
        %v2056 = vadd.f32 %v2052, %v1999
        %v2057 = vadd.f32 %v2053, %v2015
        %v2058 = vadd.f32 %v2054, %v1968
        %v2059 = vadd.f32 %v2055, %v1984
        %v2060 = vadd.f32 %v2056, %v2000
        %v2061 = vadd.f32 %v2057, %v2016
        %v2062 = vadd.f32 %v2058, %v1969
        %v2063 = vadd.f32 %v2059, %v1985
        %v2064 = vadd.f32 %v2060, %v2001
        %v2065 = vadd.f32 %v2061, %v2017
        %v2066 = vadd.f32 %v2062, %v1970
        %v2067 = vadd.f32 %v2063, %v1986
        %v2068 = vadd.f32 %v2064, %v2002
        %v2069 = vadd.f32 %v2065, %v2018
        %v2070 = vadd.f32 %v2066, %v1971
        %v2071 = vadd.f32 %v2067, %v1987
        %v2072 = vadd.f32 %v2068, %v2003
        %v2073 = vadd.f32 %v2069, %v2019
        %v2074 = vadd.f32 %v2070, %v1972
        %v2075 = vadd.f32 %v2071, %v1988
        %v2076 = vadd.f32 %v2072, %v2004
        %v2077 = vadd.f32 %v2073, %v2020
        %v2078 = vadd.f32 %v2074, %v1973
        %v2079 = vadd.f32 %v2075, %v1989
        %v2080 = vadd.f32 %v2076, %v2005
        %v2081 = vadd.f32 %v2077, %v2021
        %v2082 = vmul.f32 %v2078, 0.0625
        %v2083 = vmul.f32 %v2079, 0.0625
        %v2084 = vmul.f32 %v2080, 0.0625
        %v2085 = vmul.f32 %v2081, 0.0625
        %2086 = vst [vmem:[%s311] sm:$0xff] %v532
        %2087 = vst [vmem:[%s311 + $0x8] sm:$0xff] %v537
        %2088 = vst [vmem:[%s311 + $0x10] sm:$0xff] %v542
        %2089 = vst [vmem:[%s311 + $0x18] sm:$0xff] %v547
        %2090 = vst [vmem:[%s311 + $0x20] sm:$0xff] %v2082
        %2091 = vst [vmem:[%s311 + $0x28] sm:$0xff] %v2083
        %2092 = vst [vmem:[%s311 + $0x30] sm:$0xff] %v2084
        %2093 = vst [vmem:[%s311 + $0x38] sm:$0xff] %v2085
        %s2094 = sand.u32 %s208, 1
        %s2095 = scalar_lea.sflag [#allocation3], %s2094
        %s2096 = sand.u32 %s208, 1
        %s2097 = smul.addr %s2096, 64
        %s2098 = scalar_lea.vmem [#allocation2], %s2097
        // Predicated region
        $region53: #{tpu_custom_call.1} parent=51 // pred_check
          %p2099 = pneg %p218
        $region54: #{tpu_custom_call.1} parent=51 // pred_check_branch
          %2101 = sbr.rel (%p2099) target = $region56
        $region55: #{tpu_custom_call.1} parent=51 // pred_region
          %s2103 = ssub.s32 1024, 1024
          %2104 = vsyncadd %s2095, %s2103
          %s2105 = smul.addr %s22, 128
          %s2106 = scalar_lea.hbm %s8, %s2105
          %s2107 = sshll.u32 %s2098, 4
          %s2108 = int_to_ptr.vmem [resolvable:$true] %s2107
          %2113 = dma.vmem_to_hbm [thread:$0]  %s2108, 1024, %s2106, %s2095, 128, 256, 8
        $region56: #{tpu_custom_call.1} parent=51 // pred_fallthru
          _
      $region52: #{tpu_custom_call.1} parent=5 // pred_fallthru
        _
      %p2114 = scmp.le.s32.totalorder 2, %s17
      // Predicated region
      $region57: #{tpu_custom_call.1} parent=5 // pred_check
        %p2115 = pneg %p2114
      $region58: #{tpu_custom_call.1} parent=5 // pred_check_branch
        %2117 = sbr.rel (%p2115) target = $region60
      $region59: #{tpu_custom_call.1} parent=5 // pred_region
        %s2118 = ssub.s32 %s17, 2
        // Predicated region
        $region61: #{tpu_custom_call.1} parent=59 // pred_check
          %p2119 = pneg %p224
        $region62: #{tpu_custom_call.1} parent=59 // pred_check_branch
          %2121 = sbr.rel (%p2119) target = $region64
        $region63: #{tpu_custom_call.1} parent=59 // pred_region
          %s2122 = sand.u32 %s209, 1
          %s2123 = scalar_lea.sflag [#allocation3], %s2122
          %s2124 = sand.u32 %s209, 1
          %s2125 = smul.addr %s2124, 64
          %s2126 = scalar_lea.vmem [#allocation2], %s2125
          %2127 = dma.done %s2123, 1024
        $region64: #{tpu_custom_call.1} parent=59 // pred_fallthru
          _
      $region60: #{tpu_custom_call.1} parent=5 // pred_fallthru
        _
    $region6: #{tpu_custom_call.1} parent=1 // loop_footer
      %s21 = sadd.s32 1, %s17
    $region7: #{tpu_custom_call.1} parent=1 // loop_footer_branch
      %16 = sbr.rel target = $region3
    $region8: #{tpu_custom_call.1} parent=1 // loop_exit
      _
    %2128 = vsyncpa [#allocation3], 1
    %s2129 = scalar_lea.sflag [#allocation3], 1
    %2130 = vsyncpa %s2129, 1

</llo_original>
